<compile_context>
chip_gen: v5e
topology: v5e:2x2
jax: 0.10.0
libtpu: 0.0.40
codegen_flags: <defaults>
</compile_context>

<pallas_src>
import math
from functools import partial

import jax
import jax.numpy as jnp
import numpy as np
from jax import lax
from jax.experimental import pallas as pl
from jax.experimental.pallas import tpu as pltpu


# ----------------------------------------------------------------------------- kernel
def mamba1_icl_kernel(
    x_ref,      # (Lx, B, d_model)          time-major x tokens
    y_ref,      # (Ly, B, 1)                time-major scalar y values
    small_ref,  # (16, 128)                 packed small params (see fuse_params)
    win_ref,    # (d_model, 2*d_inner)      in_proj weight, [x | z] fused
    wbcd_ref,   # (d_inner, 2*d_state+d_inner)  x_proj weight, [B | C | dt_composed]
    atile_ref,  # (d_inner, B*d_state)      -exp(A_log) tiled over B along lanes
    out_ref,    # (B, 1)                    final prediction
    *, d_conv, d_state,
):
    f32 = jnp.float32
    Lx, B, d_model = x_ref.shape
    Ly = y_ref.shape[0]
    d_inner = win_ref.shape[1] // 2
    n = min(Lx, Ly)
    L = Lx + n                      # interleaved sequence length
    LB = L * B
    BS = B * d_state                # packed lane width of the scan state
    # NOTE: slices below stay 128-lane aligned when (B*d_state) % 128 == 0
    # (true for the module defaults B=2, d_state=64); other values remain
    # correct but lose some lane efficiency.

    # ---- 0. unpack the small-parameter slab (one DMA instead of nine) -------
    small = small_ref[...]
    wyp   = small[0:1, :d_model]
    byp   = small[1:2, :d_model]
    convw = small[2:2 + d_conv, :d_inner]
    convb = small[2 + d_conv:3 + d_conv, :d_inner]
    bdt   = small[3 + d_conv:4 + d_conv, :d_inner]
    Dvec  = small[4 + d_conv:5 + d_conv, :d_inner]
    woh   = small[5 + d_conv:6 + d_conv, :d_inner]
    bhead = small[6 + d_conv:7 + d_conv, 0:1]

    # ---- 1. interleave x / proj(y): x_0, proj(y_0), x_1, proj(y_1), ... -----
    x3 = x_ref[...]                                            # (Lx, B, d_model)
    yproj = y_ref[...] * wyp + byp                             # (Ly, B, d_model)
    inter = jnp.concatenate(
        [jnp.expand_dims(x3[:n], 1), jnp.expand_dims(yproj[:n], 1)], axis=1)
    seq3 = inter.reshape(2 * n, B, d_model)
    if Lx > n:
        seq3 = jnp.concatenate([seq3, x3[n:]], axis=0)
    seq2d = seq3.reshape(LB, d_model)                          # rows = t*B + b

    # ---- 2. fused in_proj (x and z halves in one MXU push) ------------------
    proj_in = jnp.dot(seq2d, win_ref[...], preferred_element_type=f32)
    x_in = proj_in[:, :d_inner]                                # (LB, d_inner)
    z_last = proj_in[(L - 1) * B:, d_inner:]                   # (B, d_inner)

    # ---- 3. depthwise causal conv1d + SiLU -----------------------------------
    pad = jnp.zeros(((d_conv - 1) * B, d_inner), f32)
    xpad = jnp.concatenate([pad, x_in], axis=0)                # ((L+dc-1)*B, d_inner)
    x_conv = jnp.broadcast_to(convb, (LB, d_inner))
    for k in range(d_conv):
        x_conv = x_conv + xpad[k * B:(k + L) * B, :] * convw[k:k + 1, :]
    u2d = x_conv * pl.reciprocal(1.0 + jnp.exp(-x_conv), approx=True)  # (LB, d_inner)

    # ---- 4. fused x_proj: B | C | dt(composed) in one MXU push ---------------
    proj = jnp.dot(u2d, wbcd_ref[...], preferred_element_type=f32)  # (LB, 2ds+di)
    Bm2d = proj[:, :d_state]                                   # (LB, d_state)
    C_last = proj[(L - 1) * B:, d_state:2 * d_state]           # (B, d_state)
    dt_lin = proj[:, 2 * d_state:] + bdt                       # (LB, d_inner)
    dt = jnp.where(dt_lin > 20.0, dt_lin,
                   jnp.log(1.0 + jnp.exp(jnp.minimum(dt_lin, 20.0))))  # softplus
    dtu = dt * u2d                                             # (LB, d_inner)

    # ---- 5. whole-tensor lane expansion for the scan operands ---------------
    # rep[:, c*ds + s] = DDT[:, c]  (c = t*B + b), via one expansion matmul so
    # the scan body only touches 128-lane-aligned static slices.
    cs = lax.broadcasted_iota(jnp.int32, (LB, LB * d_state), 1)
    rs = lax.broadcasted_iota(jnp.int32, (LB, LB * d_state), 0)
    Rexp = ((cs >= rs * d_state) & (cs < (rs + 1) * d_state)).astype(f32)
    DDT = jnp.transpose(jnp.concatenate([dt, dtu], axis=1))    # (2*d_inner, LB)
    rep = jnp.dot(DDT, Rexp, preferred_element_type=f32)       # (2*d_inner, LB*ds)
    dt_rep = rep[:d_inner]                                     # (d_inner, LB*ds)
    dtu_rep = rep[d_inner:]

    # Bm repacked to (L, B*d_state): row t = [Bm[t*B+0] | ... | Bm[t*B+B-1]]
    pr = lax.broadcasted_iota(jnp.int32, (L, LB), 0)
    pc = lax.broadcasted_iota(jnp.int32, (L, LB), 1)
    Psel = jnp.concatenate([(pc == B * pr + b).astype(f32) for b in range(B)],
                           axis=0)                             # (B*L, LB)
    bm_tmp = jnp.dot(Psel, Bm2d, preferred_element_type=f32)   # (B*L, d_state)
    Bm_r = jnp.concatenate([bm_tmp[b * L:(b + 1) * L] for b in range(B)], axis=1)

    A_t = atile_ref[...]                                       # (d_inner, BS)

    # ---- selective scan: exp + FMA in the unrolled body (no scratch) --------
    h = jnp.zeros((d_inner, BS), f32)
    for t in range(L):
        lo = t * BS
        dA = jnp.exp(dt_rep[:, lo:lo + BS] * A_t)              # (d_inner, BS)
        dBu = dtu_rep[:, lo:lo + BS] * Bm_r[t:t + 1, :]        # row broadcast
        h = dA * h + dBu

    # ---- 6. last-token output (module takes [:, -1, :]); VPU/XLU epilogue ---
    u_last = u2d[(L - 1) * B:, :]                              # (B, d_inner)
    C_row = jnp.concatenate([C_last[b:b + 1, :] for b in range(B)], axis=1)
    hc = h * C_row                                             # (d_inner, BS)
    y_ssmT = jnp.concatenate(
        [jnp.sum(hc[:, b * d_state:(b + 1) * d_state], axis=1, keepdims=True)
         for b in range(B)], axis=1)                           # (d_inner, B)
    y_ssm = jnp.transpose(y_ssmT)                              # (B, d_inner)
    gate = z_last * pl.reciprocal(1.0 + jnp.exp(-z_last), approx=True)
    y_out = (y_ssm + Dvec * u_last) * gate                     # (B, d_inner)
    out_ref[...] = (jnp.sum(y_out * woh, axis=1, keepdims=True) + bhead)


# ----------------------------------------------------------------------------- wrapper
def fuse_params(p):
    """One-time weight folding + packing into few DMA-friendly slabs."""
    d_conv, d_inner = p["conv_w_t"].shape
    d_model = p["w_yp"].shape[1]
    assert d_model <= 128 and d_inner <= 128

    def row(v):
        v = jnp.asarray(v, jnp.float32).reshape(1, -1)
        return jnp.pad(v, ((0, 0), (0, 128 - v.shape[1])))

    rows = ([row(p["w_yp"]), row(p["b_yp"])]
            + [row(p["conv_w_t"][k]) for k in range(d_conv)]
            + [row(p["conv_b"]), row(p["b_dt"]), row(p["D"]),
               row(jnp.transpose(p["w_out_t"] @ p["w_head_t"])),   # fused out head
               row(p["b_head"])])
    small = jnp.concatenate(rows, axis=0)
    small = jnp.pad(small, ((0, (-small.shape[0]) % 8), (0, 0)))   # (8k, 128)

    return {
        "small": small,
        "w_in": jnp.concatenate([p["w_in_x_t"], p["w_in_z_t"]], axis=1),
        "w_bcdt": jnp.concatenate(
            [p["w_x_B_t"], p["w_x_C_t"], p["w_x_dt_t"] @ p["w_dt_t"]], axis=1),
        "A_neg": -jnp.exp(p["A_log"]),                 # folded: no in-kernel exp
        "d_conv": d_conv,
        "d_state": p["A_log"].shape[1],
    }


def mamba1_icl_forward(fp, x, y):
    # TODO(synk): y=None path (no interleaving) is not wired; this mirrors the
    # y-provided branch of the PyTorch forward.
    B, Lx, d_model = x.shape
    d_state = fp["d_state"]
    d_conv = fp["d_conv"]

    x_t = jnp.transpose(x, (1, 0, 2)).astype(jnp.float32)           # (Lx, B, d_model)
    y_t = jnp.transpose(y, (1, 0))[:, :, None].astype(jnp.float32)  # (Ly, B, 1)
    a_tiled = jnp.tile(fp["A_neg"], (1, B))                          # (d_inner, B*ds)

    inputs = (x_t, y_t, fp["small"], fp["w_in"], fp["w_bcdt"], a_tiled)

    return pl.pallas_call(
        partial(mamba1_icl_kernel, d_conv=d_conv, d_state=d_state),
        out_shape=jax.ShapeDtypeStruct((B, 1), jnp.float32),
        in_specs=[pl.BlockSpec(memory_space=pltpu.MemorySpace.VMEM)] * len(inputs),
        out_specs=pl.BlockSpec(memory_space=pltpu.MemorySpace.VMEM),
    )(*inputs)


# ----------------------------------------------------------------------------- params
def init_params(key, d_model=20, d_state=64, d_conv=4, expand=2):
    d_inner = expand * d_model
    dt_rank = math.ceil(d_model / 16)
    ks = jax.random.split(key, 12)

    def uni(k, shape, scale):
        return jax.random.uniform(k, shape, jnp.float32, -scale, scale)

    p = {}
    p["w_in_x_t"] = uni(ks[0], (d_model, d_inner), 1.0 / math.sqrt(d_model))
    p["w_in_z_t"] = uni(ks[1], (d_model, d_inner), 1.0 / math.sqrt(d_model))
    p["conv_w_t"] = uni(ks[2], (d_conv, d_inner), 1.0 / math.sqrt(d_conv))
    p["conv_b"] = uni(ks[3], (1, d_inner), 1.0 / math.sqrt(d_conv))
    p["w_x_dt_t"] = uni(ks[4], (d_inner, dt_rank), 1.0 / math.sqrt(d_inner))
    p["w_x_B_t"] = uni(ks[5], (d_inner, d_state), 1.0 / math.sqrt(d_inner))
    p["w_x_C_t"] = uni(ks[6], (d_inner, d_state), 1.0 / math.sqrt(d_inner))
    p["w_dt_t"] = uni(ks[7], (dt_rank, d_inner), 1.0 / math.sqrt(dt_rank))
    # dt bias = inverse-softplus of dt values in [1e-3, 1e-1] (mamba-style init)
    dt_init = jnp.exp(jax.random.uniform(ks[8], (d_inner,), jnp.float32,
                                         math.log(1e-3), math.log(1e-1)))
    p["b_dt"] = jnp.log(jnp.expm1(dt_init))[None, :]
    A = jnp.tile(jnp.arange(1, d_state + 1, dtype=jnp.float32)[None, :], (d_inner, 1))
    p["A_log"] = jnp.log(A)
    p["D"] = jnp.ones((1, d_inner), jnp.float32)
    p["w_out_t"] = uni(ks[9], (d_inner, d_model), 1.0 / math.sqrt(d_inner))
    p["w_head_t"] = uni(ks[10], (d_model, 1), 1.0 / math.sqrt(d_model))
    p["b_head"] = jnp.zeros((1, 1), jnp.float32)
    p["w_yp"] = uni(ks[11], (1, d_model), 1.0)
    p["b_yp"] = jnp.zeros((1, d_model), jnp.float32)
    return p


# ----------------------------------------------------------------------------- pure-JAX reference
def reference_forward(params, x, y):
    B, Lx, d_model = x.shape
    Ly = y.shape[1]
    toks = []
    for i in range(Lx):
        toks.append(x[:, i, :])
        if i < Ly:
            toks.append(y[:, i:i + 1] * params["w_yp"] + params["b_yp"])
    seq = jnp.stack(toks, axis=1)                                   # (B, L, d_model)
    L = seq.shape[1]
    d_conv, d_inner = params["conv_w_t"].shape

    x_in = seq @ params["w_in_x_t"]                                 # (B, L, d_inner)
    z_in = seq @ params["w_in_z_t"]
    xpad = jnp.pad(x_in, ((0, 0), (d_conv - 1, 0), (0, 0)))
    x_conv = jnp.zeros_like(x_in) + params["conv_b"][None, :, :]
    for k in range(d_conv):
        x_conv = x_conv + xpad[:, k:k + L, :] * params["conv_w_t"][k][None, None, :]
    u = x_conv * jax.nn.sigmoid(x_conv)

    dt = jax.nn.softplus((u @ params["w_x_dt_t"]) @ params["w_dt_t"] + params["b_dt"][0])
    Bm = u @ params["w_x_B_t"]
    Cm = u @ params["w_x_C_t"]
    A = -jnp.exp(params["A_log"])

    h = jnp.zeros((B, d_inner, A.shape[1]), jnp.float32)
    for t in range(L):
        dA = jnp.exp(dt[:, t, :, None] * A[None])
        dBu = (dt[:, t, :] * u[:, t, :])[:, :, None] * Bm[:, t, None, :]
        h = dA * h + dBu

    y_last = jnp.sum(h * Cm[:, L - 1, None, :], axis=-1) + params["D"][0] * u[:, L - 1, :]
    zl = z_in[:, L - 1, :]
    y_last = y_last * (zl * jax.nn.sigmoid(zl))
    out = y_last @ params["w_out_t"]
    return out @ params["w_head_t"] + params["b_head"][0]


# ----------------------------------------------------------------------------- main
if __name__ == "__main__":
    key = jax.random.PRNGKey(0)
    kp, kx, ky = jax.random.split(key, 3)

    d_model, d_state, d_conv, expand = 20, 64, 4, 2
    B, Lx, Ly = 2, 8, 8                      # in-context points; seq len = 16

    params = init_params(kp, d_model, d_state, d_conv, expand)
    fused = fuse_params(params)
    x = jax.random.normal(kx, (B, Lx, d_model), jnp.float32)
    y = jax.random.normal(ky, (B, Ly), jnp.float32)

    out = mamba1_icl_forward(fused, x, y)
    out = jax.block_until_ready(out)

    ref = reference_forward(params, x, y)
    np.testing.assert_allclose(np.asarray(out), np.asarray(ref), rtol=2e-2, atol=2e-2)
    assert out.shape == (B, 1)

    print("KERNEL_OK")
</pallas_src>

<mosaic_0001>
module attributes {stable_mosaic.version = 11 : i64} {
  func.func @mamba1_icl_kernel(%arg0: memref<8x2x20xf32, #tpu.memory_space<vmem>>, %arg1: memref<8x2x1xf32, #tpu.memory_space<vmem>>, %arg2: memref<16x128xf32, #tpu.memory_space<vmem>>, %arg3: memref<20x80xf32, #tpu.memory_space<vmem>>, %arg4: memref<40x168xf32, #tpu.memory_space<vmem>>, %arg5: memref<40x128xf32, #tpu.memory_space<vmem>>, %arg6: memref<2x1xf32, #tpu.memory_space<vmem>>) attributes {dimension_semantics = [], scalar_prefetch = 0 : i64, scratch_operands = 0 : i64, tpu.core_type = #tpu.core_type<tc>} {
    %c0 = arith.constant 0 : index
    %c0_0 = arith.constant 0 : index
    %0 = vector.load %arg2[%c0, %c0_0] : memref<16x128xf32, #tpu.memory_space<vmem>>, vector<16x128xf32>
    %1 = vector.extract_strided_slice %0 {offsets = [0, 0], sizes = [1, 20], strides = [1, 1]} : vector<16x128xf32> to vector<1x20xf32>
    %2 = vector.extract_strided_slice %0 {offsets = [1, 0], sizes = [1, 20], strides = [1, 1]} : vector<16x128xf32> to vector<1x20xf32>
    %3 = vector.extract_strided_slice %0 {offsets = [2, 0], sizes = [4, 40], strides = [1, 1]} : vector<16x128xf32> to vector<4x40xf32>
    %4 = vector.extract_strided_slice %0 {offsets = [6, 0], sizes = [1, 40], strides = [1, 1]} : vector<16x128xf32> to vector<1x40xf32>
    %5 = vector.extract_strided_slice %0 {offsets = [7, 0], sizes = [1, 40], strides = [1, 1]} : vector<16x128xf32> to vector<1x40xf32>
    %6 = vector.extract_strided_slice %0 {offsets = [8, 0], sizes = [1, 40], strides = [1, 1]} : vector<16x128xf32> to vector<1x40xf32>
    %7 = vector.extract_strided_slice %0 {offsets = [9, 0], sizes = [1, 40], strides = [1, 1]} : vector<16x128xf32> to vector<1x40xf32>
    %8 = vector.extract_strided_slice %0 {offsets = [10, 0], sizes = [1, 1], strides = [1, 1]} : vector<16x128xf32> to vector<1x1xf32>
    %c0_1 = arith.constant 0 : index
    %c0_2 = arith.constant 0 : index
    %c0_3 = arith.constant 0 : index
    %9 = vector.load %arg0[%c0_1, %c0_2, %c0_3] : memref<8x2x20xf32, #tpu.memory_space<vmem>>, vector<8x2x20xf32>
    %c0_4 = arith.constant 0 : index
    %c0_5 = arith.constant 0 : index
    %c0_6 = arith.constant 0 : index
    %10 = vector.load %arg1[%c0_4, %c0_5, %c0_6] : memref<8x2x1xf32, #tpu.memory_space<vmem>>, vector<8x2x1xf32>
    %11 = vector.shape_cast %1 : vector<1x20xf32> to vector<1x1x20xf32>
    %12 = vector.broadcast %10 : vector<8x2x1xf32> to vector<8x2x20xf32>
    %13 = vector.broadcast %11 : vector<1x1x20xf32> to vector<8x2x20xf32>
    %14 = arith.mulf %12, %13 : vector<8x2x20xf32>
    %15 = vector.shape_cast %2 : vector<1x20xf32> to vector<1x1x20xf32>
    %16 = vector.broadcast %15 : vector<1x1x20xf32> to vector<8x2x20xf32>
    %17 = arith.addf %14, %16 : vector<8x2x20xf32>
    %18 = vector.shape_cast %9 : vector<8x2x20xf32> to vector<8x1x2x20xf32>
    %19 = vector.shape_cast %17 : vector<8x2x20xf32> to vector<8x1x2x20xf32>
    %20 = tpu.concatenate %18, %19 in 1 : vector<8x1x2x20xf32>, vector<8x1x2x20xf32> -> vector<8x2x2x20xf32>
    %21 = vector.shape_cast %20 : vector<8x2x2x20xf32> to vector<16x2x20xf32>
    %22 = vector.shape_cast %21 : vector<16x2x20xf32> to vector<32x20xf32>
    %c0_7 = arith.constant 0 : index
    %c0_8 = arith.constant 0 : index
    %23 = vector.load %arg3[%c0_7, %c0_8] : memref<20x80xf32, #tpu.memory_space<vmem>>, vector<20x80xf32>
    %cst = arith.constant dense<0.000000e+00> : vector<32x80xf32>
    %24 = tpu.matmul %22, %23, %cst {dimension_numbers = #tpu.dot_dimension_numbers<[1], [0], [0], [1], [0, 0, 1, 1], [], []>} : vector<32x20xf32>, vector<20x80xf32>, vector<32x80xf32> -> vector<32x80xf32>
    %25 = vector.extract_strided_slice %24 {offsets = [0, 0], sizes = [32, 40], strides = [1, 1]} : vector<32x80xf32> to vector<32x40xf32>
    %26 = vector.extract_strided_slice %24 {offsets = [30, 40], sizes = [2, 40], strides = [1, 1]} : vector<32x80xf32> to vector<2x40xf32>
    %cst_9 = arith.constant 0.000000e+00 : f32
    %27 = vector.broadcast %cst_9 : f32 to vector<6x40xf32>
    %28 = tpu.concatenate %27, %25 in 0 : vector<6x40xf32>, vector<32x40xf32> -> vector<38x40xf32>
    %29 = vector.shape_cast %4 : vector<1x40xf32> to vector<1x40xf32>
    %30 = vector.broadcast %29 : vector<1x40xf32> to vector<32x40xf32>
    %31 = vector.extract_strided_slice %28 {offsets = [0, 0], sizes = [32, 40], strides = [1, 1]} : vector<38x40xf32> to vector<32x40xf32>
    %32 = vector.extract_strided_slice %3 {offsets = [0, 0], sizes = [1, 40], strides = [1, 1]} : vector<4x40xf32> to vector<1x40xf32>
    %33 = vector.broadcast %32 : vector<1x40xf32> to vector<32x40xf32>
    %34 = arith.mulf %31, %33 : vector<32x40xf32>
    %35 = arith.addf %30, %34 : vector<32x40xf32>
    %36 = vector.extract_strided_slice %28 {offsets = [2, 0], sizes = [32, 40], strides = [1, 1]} : vector<38x40xf32> to vector<32x40xf32>
    %37 = vector.extract_strided_slice %3 {offsets = [1, 0], sizes = [1, 40], strides = [1, 1]} : vector<4x40xf32> to vector<1x40xf32>
    %38 = vector.broadcast %37 : vector<1x40xf32> to vector<32x40xf32>
    %39 = arith.mulf %36, %38 : vector<32x40xf32>
    %40 = arith.addf %35, %39 : vector<32x40xf32>
    %41 = vector.extract_strided_slice %28 {offsets = [4, 0], sizes = [32, 40], strides = [1, 1]} : vector<38x40xf32> to vector<32x40xf32>
    %42 = vector.extract_strided_slice %3 {offsets = [2, 0], sizes = [1, 40], strides = [1, 1]} : vector<4x40xf32> to vector<1x40xf32>
    %43 = vector.broadcast %42 : vector<1x40xf32> to vector<32x40xf32>
    %44 = arith.mulf %41, %43 : vector<32x40xf32>
    %45 = arith.addf %40, %44 : vector<32x40xf32>
    %46 = vector.extract_strided_slice %28 {offsets = [6, 0], sizes = [32, 40], strides = [1, 1]} : vector<38x40xf32> to vector<32x40xf32>
    %47 = vector.extract_strided_slice %3 {offsets = [3, 0], sizes = [1, 40], strides = [1, 1]} : vector<4x40xf32> to vector<1x40xf32>
    %48 = vector.broadcast %47 : vector<1x40xf32> to vector<32x40xf32>
    %49 = arith.mulf %46, %48 : vector<32x40xf32>
    %50 = arith.addf %45, %49 : vector<32x40xf32>
    %cst_10 = arith.constant 0.000000e+00 : f32
    %51 = vector.broadcast %cst_10 : f32 to vector<32x40xf32>
    %52 = arith.subf %51, %50 : vector<32x40xf32>
    %53 = math.exp %52 : vector<32x40xf32>
    %cst_11 = arith.constant 1.000000e+00 : f32
    %54 = vector.broadcast %cst_11 : f32 to vector<32x40xf32>
    %55 = arith.addf %54, %53 : vector<32x40xf32>
    %56 = tpu.reciprocal %55 {approx = true} : vector<32x40xf32> -> vector<32x40xf32>
    %57 = arith.mulf %50, %56 : vector<32x40xf32>
    %c0_12 = arith.constant 0 : index
    %c0_13 = arith.constant 0 : index
    %58 = vector.load %arg4[%c0_12, %c0_13] : memref<40x168xf32, #tpu.memory_space<vmem>>, vector<40x168xf32>
    %cst_14 = arith.constant dense<0.000000e+00> : vector<32x168xf32>
    %59 = tpu.matmul %57, %58, %cst_14 {dimension_numbers = #tpu.dot_dimension_numbers<[1], [0], [0], [1], [0, 0, 1, 1], [], []>} : vector<32x40xf32>, vector<40x168xf32>, vector<32x168xf32> -> vector<32x168xf32>
    %60 = vector.extract_strided_slice %59 {offsets = [0, 0], sizes = [32, 64], strides = [1, 1]} : vector<32x168xf32> to vector<32x64xf32>
    %61 = vector.extract_strided_slice %59 {offsets = [30, 64], sizes = [2, 64], strides = [1, 1]} : vector<32x168xf32> to vector<2x64xf32>
    %62 = vector.extract_strided_slice %59 {offsets = [0, 128], sizes = [32, 40], strides = [1, 1]} : vector<32x168xf32> to vector<32x40xf32>
    %63 = vector.broadcast %5 : vector<1x40xf32> to vector<32x40xf32>
    %64 = arith.addf %62, %63 : vector<32x40xf32>
    %cst_15 = arith.constant 2.000000e+01 : f32
    %65 = vector.broadcast %cst_15 : f32 to vector<32x40xf32>
    %66 = arith.cmpf ogt, %64, %65 : vector<32x40xf32>
    %cst_16 = arith.constant 2.000000e+01 : f32
    %67 = vector.broadcast %cst_16 : f32 to vector<32x40xf32>
    %68 = arith.minimumf %64, %67 : vector<32x40xf32>
    %69 = math.exp %68 : vector<32x40xf32>
    %cst_17 = arith.constant 1.000000e+00 : f32
    %70 = vector.broadcast %cst_17 : f32 to vector<32x40xf32>
    %71 = arith.addf %70, %69 : vector<32x40xf32>
    %72 = math.log %71 : vector<32x40xf32>
    %73 = arith.select %66, %64, %72 : vector<32x40xi1>, vector<32x40xf32>
    %74 = arith.mulf %73, %57 : vector<32x40xf32>
    %75 = tpu.iota {dimensions = array<i32: 1>} : vector<32x2048xi32>
    %76 = tpu.iota {dimensions = array<i32: 0>} : vector<32x2048xi32>
    %c64_i32 = arith.constant 64 : i32
    %77 = vector.broadcast %c64_i32 : i32 to vector<32x2048xi32>
    %78 = arith.muli %76, %77 : vector<32x2048xi32>
    %79 = arith.cmpi sge, %75, %78 : vector<32x2048xi32>
    %c1_i32 = arith.constant 1 : i32
    %80 = vector.broadcast %c1_i32 : i32 to vector<32x2048xi32>
    %81 = arith.addi %76, %80 : vector<32x2048xi32>
    %c64_i32_18 = arith.constant 64 : i32
    %82 = vector.broadcast %c64_i32_18 : i32 to vector<32x2048xi32>
    %83 = arith.muli %81, %82 : vector<32x2048xi32>
    %84 = arith.cmpi slt, %75, %83 : vector<32x2048xi32>
    %85 = arith.andi %79, %84 : vector<32x2048xi1>
    %86 = arith.extui %85 : vector<32x2048xi1> to vector<32x2048xi32>
    %87 = arith.sitofp %86 : vector<32x2048xi32> to vector<32x2048xf32>
    %88 = tpu.concatenate %73, %74 in 1 : vector<32x40xf32>, vector<32x40xf32> -> vector<32x80xf32>
    %89 = tpu.transpose %88, [1, 0] : vector<32x80xf32> -> vector<80x32xf32>
    %cst_19 = arith.constant dense<0.000000e+00> : vector<80x2048xf32>
    %90 = tpu.matmul %89, %87, %cst_19 {dimension_numbers = #tpu.dot_dimension_numbers<[1], [0], [0], [1], [0, 0, 1, 1], [], []>} : vector<80x32xf32>, vector<32x2048xf32>, vector<80x2048xf32> -> vector<80x2048xf32>
    %91 = vector.extract_strided_slice %90 {offsets = [0, 0], sizes = [40, 2048], strides = [1, 1]} : vector<80x2048xf32> to vector<40x2048xf32>
    %92 = vector.extract_strided_slice %90 {offsets = [40, 0], sizes = [40, 2048], strides = [1, 1]} : vector<80x2048xf32> to vector<40x2048xf32>
    %93 = tpu.iota {dimensions = array<i32: 0>} : vector<16x32xi32>
    %94 = tpu.iota {dimensions = array<i32: 1>} : vector<16x32xi32>
    %c2_i32 = arith.constant 2 : i32
    %95 = vector.broadcast %c2_i32 : i32 to vector<16x32xi32>
    %96 = arith.muli %95, %93 : vector<16x32xi32>
    %c0_i32 = arith.constant 0 : i32
    %97 = vector.broadcast %c0_i32 : i32 to vector<16x32xi32>
    %98 = arith.addi %96, %97 : vector<16x32xi32>
    %99 = arith.cmpi eq, %94, %98 : vector<16x32xi32>
    %100 = arith.extui %99 : vector<16x32xi1> to vector<16x32xi32>
    %101 = arith.sitofp %100 : vector<16x32xi32> to vector<16x32xf32>
    %c2_i32_20 = arith.constant 2 : i32
    %102 = vector.broadcast %c2_i32_20 : i32 to vector<16x32xi32>
    %103 = arith.muli %102, %93 : vector<16x32xi32>
    %c1_i32_21 = arith.constant 1 : i32
    %104 = vector.broadcast %c1_i32_21 : i32 to vector<16x32xi32>
    %105 = arith.addi %103, %104 : vector<16x32xi32>
    %106 = arith.cmpi eq, %94, %105 : vector<16x32xi32>
    %107 = arith.extui %106 : vector<16x32xi1> to vector<16x32xi32>
    %108 = arith.sitofp %107 : vector<16x32xi32> to vector<16x32xf32>
    %109 = tpu.concatenate %101, %108 in 0 : vector<16x32xf32>, vector<16x32xf32> -> vector<32x32xf32>
    %cst_22 = arith.constant dense<0.000000e+00> : vector<32x64xf32>
    %110 = tpu.matmul %109, %60, %cst_22 {dimension_numbers = #tpu.dot_dimension_numbers<[1], [0], [0], [1], [0, 0, 1, 1], [], []>} : vector<32x32xf32>, vector<32x64xf32>, vector<32x64xf32> -> vector<32x64xf32>
    %111 = vector.extract_strided_slice %110 {offsets = [0, 0], sizes = [16, 64], strides = [1, 1]} : vector<32x64xf32> to vector<16x64xf32>
    %112 = vector.extract_strided_slice %110 {offsets = [16, 0], sizes = [16, 64], strides = [1, 1]} : vector<32x64xf32> to vector<16x64xf32>
    %113 = tpu.concatenate %111, %112 in 1 : vector<16x64xf32>, vector<16x64xf32> -> vector<16x128xf32>
    %c0_23 = arith.constant 0 : index
    %c0_24 = arith.constant 0 : index
    %114 = vector.load %arg5[%c0_23, %c0_24] : memref<40x128xf32, #tpu.memory_space<vmem>>, vector<40x128xf32>
    %cst_25 = arith.constant 0.000000e+00 : f32
    %115 = vector.broadcast %cst_25 : f32 to vector<40x128xf32>
    %116 = vector.extract_strided_slice %91 {offsets = [0, 0], sizes = [40, 128], strides = [1, 1]} : vector<40x2048xf32> to vector<40x128xf32>
    %117 = arith.mulf %116, %114 : vector<40x128xf32>
    %118 = math.exp %117 : vector<40x128xf32>
    %119 = vector.extract_strided_slice %92 {offsets = [0, 0], sizes = [40, 128], strides = [1, 1]} : vector<40x2048xf32> to vector<40x128xf32>
    %120 = vector.extract_strided_slice %113 {offsets = [0, 0], sizes = [1, 128], strides = [1, 1]} : vector<16x128xf32> to vector<1x128xf32>
    %121 = vector.broadcast %120 : vector<1x128xf32> to vector<40x128xf32>
    %122 = arith.mulf %119, %121 : vector<40x128xf32>
    %123 = arith.mulf %118, %115 : vector<40x128xf32>
    %124 = arith.addf %123, %122 : vector<40x128xf32>
    %125 = vector.extract_strided_slice %91 {offsets = [0, 128], sizes = [40, 128], strides = [1, 1]} : vector<40x2048xf32> to vector<40x128xf32>
    %126 = arith.mulf %125, %114 : vector<40x128xf32>
    %127 = math.exp %126 : vector<40x128xf32>
    %128 = vector.extract_strided_slice %92 {offsets = [0, 128], sizes = [40, 128], strides = [1, 1]} : vector<40x2048xf32> to vector<40x128xf32>
    %129 = vector.extract_strided_slice %113 {offsets = [1, 0], sizes = [1, 128], strides = [1, 1]} : vector<16x128xf32> to vector<1x128xf32>
    %130 = vector.broadcast %129 : vector<1x128xf32> to vector<40x128xf32>
    %131 = arith.mulf %128, %130 : vector<40x128xf32>
    %132 = arith.mulf %127, %124 : vector<40x128xf32>
    %133 = arith.addf %132, %131 : vector<40x128xf32>
    %134 = vector.extract_strided_slice %91 {offsets = [0, 256], sizes = [40, 128], strides = [1, 1]} : vector<40x2048xf32> to vector<40x128xf32>
    %135 = arith.mulf %134, %114 : vector<40x128xf32>
    %136 = math.exp %135 : vector<40x128xf32>
    %137 = vector.extract_strided_slice %92 {offsets = [0, 256], sizes = [40, 128], strides = [1, 1]} : vector<40x2048xf32> to vector<40x128xf32>
    %138 = vector.extract_strided_slice %113 {offsets = [2, 0], sizes = [1, 128], strides = [1, 1]} : vector<16x128xf32> to vector<1x128xf32>
    %139 = vector.broadcast %138 : vector<1x128xf32> to vector<40x128xf32>
    %140 = arith.mulf %137, %139 : vector<40x128xf32>
    %141 = arith.mulf %136, %133 : vector<40x128xf32>
    %142 = arith.addf %141, %140 : vector<40x128xf32>
    %143 = vector.extract_strided_slice %91 {offsets = [0, 384], sizes = [40, 128], strides = [1, 1]} : vector<40x2048xf32> to vector<40x128xf32>
    %144 = arith.mulf %143, %114 : vector<40x128xf32>
    %145 = math.exp %144 : vector<40x128xf32>
    %146 = vector.extract_strided_slice %92 {offsets = [0, 384], sizes = [40, 128], strides = [1, 1]} : vector<40x2048xf32> to vector<40x128xf32>
    %147 = vector.extract_strided_slice %113 {offsets = [3, 0], sizes = [1, 128], strides = [1, 1]} : vector<16x128xf32> to vector<1x128xf32>
    %148 = vector.broadcast %147 : vector<1x128xf32> to vector<40x128xf32>
    %149 = arith.mulf %146, %148 : vector<40x128xf32>
    %150 = arith.mulf %145, %142 : vector<40x128xf32>
    %151 = arith.addf %150, %149 : vector<40x128xf32>
    %152 = vector.extract_strided_slice %91 {offsets = [0, 512], sizes = [40, 128], strides = [1, 1]} : vector<40x2048xf32> to vector<40x128xf32>
    %153 = arith.mulf %152, %114 : vector<40x128xf32>
    %154 = math.exp %153 : vector<40x128xf32>
    %155 = vector.extract_strided_slice %92 {offsets = [0, 512], sizes = [40, 128], strides = [1, 1]} : vector<40x2048xf32> to vector<40x128xf32>
    %156 = vector.extract_strided_slice %113 {offsets = [4, 0], sizes = [1, 128], strides = [1, 1]} : vector<16x128xf32> to vector<1x128xf32>
    %157 = vector.broadcast %156 : vector<1x128xf32> to vector<40x128xf32>
    %158 = arith.mulf %155, %157 : vector<40x128xf32>
    %159 = arith.mulf %154, %151 : vector<40x128xf32>
    %160 = arith.addf %159, %158 : vector<40x128xf32>
    %161 = vector.extract_strided_slice %91 {offsets = [0, 640], sizes = [40, 128], strides = [1, 1]} : vector<40x2048xf32> to vector<40x128xf32>
    %162 = arith.mulf %161, %114 : vector<40x128xf32>
    %163 = math.exp %162 : vector<40x128xf32>
    %164 = vector.extract_strided_slice %92 {offsets = [0, 640], sizes = [40, 128], strides = [1, 1]} : vector<40x2048xf32> to vector<40x128xf32>
    %165 = vector.extract_strided_slice %113 {offsets = [5, 0], sizes = [1, 128], strides = [1, 1]} : vector<16x128xf32> to vector<1x128xf32>
    %166 = vector.broadcast %165 : vector<1x128xf32> to vector<40x128xf32>
    %167 = arith.mulf %164, %166 : vector<40x128xf32>
    %168 = arith.mulf %163, %160 : vector<40x128xf32>
    %169 = arith.addf %168, %167 : vector<40x128xf32>
    %170 = vector.extract_strided_slice %91 {offsets = [0, 768], sizes = [40, 128], strides = [1, 1]} : vector<40x2048xf32> to vector<40x128xf32>
    %171 = arith.mulf %170, %114 : vector<40x128xf32>
    %172 = math.exp %171 : vector<40x128xf32>
    %173 = vector.extract_strided_slice %92 {offsets = [0, 768], sizes = [40, 128], strides = [1, 1]} : vector<40x2048xf32> to vector<40x128xf32>
    %174 = vector.extract_strided_slice %113 {offsets = [6, 0], sizes = [1, 128], strides = [1, 1]} : vector<16x128xf32> to vector<1x128xf32>
    %175 = vector.broadcast %174 : vector<1x128xf32> to vector<40x128xf32>
    %176 = arith.mulf %173, %175 : vector<40x128xf32>
    %177 = arith.mulf %172, %169 : vector<40x128xf32>
    %178 = arith.addf %177, %176 : vector<40x128xf32>
    %179 = vector.extract_strided_slice %91 {offsets = [0, 896], sizes = [40, 128], strides = [1, 1]} : vector<40x2048xf32> to vector<40x128xf32>
    %180 = arith.mulf %179, %114 : vector<40x128xf32>
    %181 = math.exp %180 : vector<40x128xf32>
    %182 = vector.extract_strided_slice %92 {offsets = [0, 896], sizes = [40, 128], strides = [1, 1]} : vector<40x2048xf32> to vector<40x128xf32>
    %183 = vector.extract_strided_slice %113 {offsets = [7, 0], sizes = [1, 128], strides = [1, 1]} : vector<16x128xf32> to vector<1x128xf32>
    %184 = vector.broadcast %183 : vector<1x128xf32> to vector<40x128xf32>
    %185 = arith.mulf %182, %184 : vector<40x128xf32>
    %186 = arith.mulf %181, %178 : vector<40x128xf32>
    %187 = arith.addf %186, %185 : vector<40x128xf32>
    %188 = vector.extract_strided_slice %91 {offsets = [0, 1024], sizes = [40, 128], strides = [1, 1]} : vector<40x2048xf32> to vector<40x128xf32>
    %189 = arith.mulf %188, %114 : vector<40x128xf32>
    %190 = math.exp %189 : vector<40x128xf32>
    %191 = vector.extract_strided_slice %92 {offsets = [0, 1024], sizes = [40, 128], strides = [1, 1]} : vector<40x2048xf32> to vector<40x128xf32>
    %192 = vector.extract_strided_slice %113 {offsets = [8, 0], sizes = [1, 128], strides = [1, 1]} : vector<16x128xf32> to vector<1x128xf32>
    %193 = vector.broadcast %192 : vector<1x128xf32> to vector<40x128xf32>
    %194 = arith.mulf %191, %193 : vector<40x128xf32>
    %195 = arith.mulf %190, %187 : vector<40x128xf32>
    %196 = arith.addf %195, %194 : vector<40x128xf32>
    %197 = vector.extract_strided_slice %91 {offsets = [0, 1152], sizes = [40, 128], strides = [1, 1]} : vector<40x2048xf32> to vector<40x128xf32>
    %198 = arith.mulf %197, %114 : vector<40x128xf32>
    %199 = math.exp %198 : vector<40x128xf32>
    %200 = vector.extract_strided_slice %92 {offsets = [0, 1152], sizes = [40, 128], strides = [1, 1]} : vector<40x2048xf32> to vector<40x128xf32>
    %201 = vector.extract_strided_slice %113 {offsets = [9, 0], sizes = [1, 128], strides = [1, 1]} : vector<16x128xf32> to vector<1x128xf32>
    %202 = vector.broadcast %201 : vector<1x128xf32> to vector<40x128xf32>
    %203 = arith.mulf %200, %202 : vector<40x128xf32>
    %204 = arith.mulf %199, %196 : vector<40x128xf32>
    %205 = arith.addf %204, %203 : vector<40x128xf32>
    %206 = vector.extract_strided_slice %91 {offsets = [0, 1280], sizes = [40, 128], strides = [1, 1]} : vector<40x2048xf32> to vector<40x128xf32>
    %207 = arith.mulf %206, %114 : vector<40x128xf32>
    %208 = math.exp %207 : vector<40x128xf32>
    %209 = vector.extract_strided_slice %92 {offsets = [0, 1280], sizes = [40, 128], strides = [1, 1]} : vector<40x2048xf32> to vector<40x128xf32>
    %210 = vector.extract_strided_slice %113 {offsets = [10, 0], sizes = [1, 128], strides = [1, 1]} : vector<16x128xf32> to vector<1x128xf32>
    %211 = vector.broadcast %210 : vector<1x128xf32> to vector<40x128xf32>
    %212 = arith.mulf %209, %211 : vector<40x128xf32>
    %213 = arith.mulf %208, %205 : vector<40x128xf32>
    %214 = arith.addf %213, %212 : vector<40x128xf32>
    %215 = vector.extract_strided_slice %91 {offsets = [0, 1408], sizes = [40, 128], strides = [1, 1]} : vector<40x2048xf32> to vector<40x128xf32>
    %216 = arith.mulf %215, %114 : vector<40x128xf32>
    %217 = math.exp %216 : vector<40x128xf32>
    %218 = vector.extract_strided_slice %92 {offsets = [0, 1408], sizes = [40, 128], strides = [1, 1]} : vector<40x2048xf32> to vector<40x128xf32>
    %219 = vector.extract_strided_slice %113 {offsets = [11, 0], sizes = [1, 128], strides = [1, 1]} : vector<16x128xf32> to vector<1x128xf32>
    %220 = vector.broadcast %219 : vector<1x128xf32> to vector<40x128xf32>
    %221 = arith.mulf %218, %220 : vector<40x128xf32>
    %222 = arith.mulf %217, %214 : vector<40x128xf32>
    %223 = arith.addf %222, %221 : vector<40x128xf32>
    %224 = vector.extract_strided_slice %91 {offsets = [0, 1536], sizes = [40, 128], strides = [1, 1]} : vector<40x2048xf32> to vector<40x128xf32>
    %225 = arith.mulf %224, %114 : vector<40x128xf32>
    %226 = math.exp %225 : vector<40x128xf32>
    %227 = vector.extract_strided_slice %92 {offsets = [0, 1536], sizes = [40, 128], strides = [1, 1]} : vector<40x2048xf32> to vector<40x128xf32>
    %228 = vector.extract_strided_slice %113 {offsets = [12, 0], sizes = [1, 128], strides = [1, 1]} : vector<16x128xf32> to vector<1x128xf32>
    %229 = vector.broadcast %228 : vector<1x128xf32> to vector<40x128xf32>
    %230 = arith.mulf %227, %229 : vector<40x128xf32>
    %231 = arith.mulf %226, %223 : vector<40x128xf32>
    %232 = arith.addf %231, %230 : vector<40x128xf32>
    %233 = vector.extract_strided_slice %91 {offsets = [0, 1664], sizes = [40, 128], strides = [1, 1]} : vector<40x2048xf32> to vector<40x128xf32>
    %234 = arith.mulf %233, %114 : vector<40x128xf32>
    %235 = math.exp %234 : vector<40x128xf32>
    %236 = vector.extract_strided_slice %92 {offsets = [0, 1664], sizes = [40, 128], strides = [1, 1]} : vector<40x2048xf32> to vector<40x128xf32>
    %237 = vector.extract_strided_slice %113 {offsets = [13, 0], sizes = [1, 128], strides = [1, 1]} : vector<16x128xf32> to vector<1x128xf32>
    %238 = vector.broadcast %237 : vector<1x128xf32> to vector<40x128xf32>
    %239 = arith.mulf %236, %238 : vector<40x128xf32>
    %240 = arith.mulf %235, %232 : vector<40x128xf32>
    %241 = arith.addf %240, %239 : vector<40x128xf32>
    %242 = vector.extract_strided_slice %91 {offsets = [0, 1792], sizes = [40, 128], strides = [1, 1]} : vector<40x2048xf32> to vector<40x128xf32>
    %243 = arith.mulf %242, %114 : vector<40x128xf32>
    %244 = math.exp %243 : vector<40x128xf32>
    %245 = vector.extract_strided_slice %92 {offsets = [0, 1792], sizes = [40, 128], strides = [1, 1]} : vector<40x2048xf32> to vector<40x128xf32>
    %246 = vector.extract_strided_slice %113 {offsets = [14, 0], sizes = [1, 128], strides = [1, 1]} : vector<16x128xf32> to vector<1x128xf32>
    %247 = vector.broadcast %246 : vector<1x128xf32> to vector<40x128xf32>
    %248 = arith.mulf %245, %247 : vector<40x128xf32>
    %249 = arith.mulf %244, %241 : vector<40x128xf32>
    %250 = arith.addf %249, %248 : vector<40x128xf32>
    %251 = vector.extract_strided_slice %91 {offsets = [0, 1920], sizes = [40, 128], strides = [1, 1]} : vector<40x2048xf32> to vector<40x128xf32>
    %252 = arith.mulf %251, %114 : vector<40x128xf32>
    %253 = math.exp %252 : vector<40x128xf32>
    %254 = vector.extract_strided_slice %92 {offsets = [0, 1920], sizes = [40, 128], strides = [1, 1]} : vector<40x2048xf32> to vector<40x128xf32>
    %255 = vector.extract_strided_slice %113 {offsets = [15, 0], sizes = [1, 128], strides = [1, 1]} : vector<16x128xf32> to vector<1x128xf32>
    %256 = vector.broadcast %255 : vector<1x128xf32> to vector<40x128xf32>
    %257 = arith.mulf %254, %256 : vector<40x128xf32>
    %258 = arith.mulf %253, %250 : vector<40x128xf32>
    %259 = arith.addf %258, %257 : vector<40x128xf32>
    %260 = vector.extract_strided_slice %57 {offsets = [30, 0], sizes = [2, 40], strides = [1, 1]} : vector<32x40xf32> to vector<2x40xf32>
    %261 = vector.extract_strided_slice %61 {offsets = [0, 0], sizes = [1, 64], strides = [1, 1]} : vector<2x64xf32> to vector<1x64xf32>
    %262 = vector.extract_strided_slice %61 {offsets = [1, 0], sizes = [1, 64], strides = [1, 1]} : vector<2x64xf32> to vector<1x64xf32>
    %263 = tpu.concatenate %261, %262 in 1 : vector<1x64xf32>, vector<1x64xf32> -> vector<1x128xf32>
    %264 = vector.broadcast %263 : vector<1x128xf32> to vector<40x128xf32>
    %265 = arith.mulf %259, %264 : vector<40x128xf32>
    %266 = vector.extract_strided_slice %265 {offsets = [0, 0], sizes = [40, 64], strides = [1, 1]} : vector<40x128xf32> to vector<40x64xf32>
    %cst_26 = arith.constant dense<0.000000e+00> : vector<40xf32>
    %267 = vector.multi_reduction <add>, %266, %cst_26 [1] : vector<40x64xf32> to vector<40xf32>
    %268 = vector.shape_cast %267 : vector<40xf32> to vector<40x1xf32>
    %269 = vector.extract_strided_slice %265 {offsets = [0, 64], sizes = [40, 64], strides = [1, 1]} : vector<40x128xf32> to vector<40x64xf32>
    %cst_27 = arith.constant dense<0.000000e+00> : vector<40xf32>
    %270 = vector.multi_reduction <add>, %269, %cst_27 [1] : vector<40x64xf32> to vector<40xf32>
    %271 = vector.shape_cast %270 : vector<40xf32> to vector<40x1xf32>
    %272 = tpu.concatenate %268, %271 in 1 : vector<40x1xf32>, vector<40x1xf32> -> vector<40x2xf32>
    %273 = tpu.transpose %272, [1, 0] : vector<40x2xf32> -> vector<2x40xf32>
    %cst_28 = arith.constant 0.000000e+00 : f32
    %274 = vector.broadcast %cst_28 : f32 to vector<2x40xf32>
    %275 = arith.subf %274, %26 : vector<2x40xf32>
    %276 = math.exp %275 : vector<2x40xf32>
    %cst_29 = arith.constant 1.000000e+00 : f32
    %277 = vector.broadcast %cst_29 : f32 to vector<2x40xf32>
    %278 = arith.addf %277, %276 : vector<2x40xf32>
    %279 = tpu.reciprocal %278 {approx = true} : vector<2x40xf32> -> vector<2x40xf32>
    %280 = arith.mulf %26, %279 : vector<2x40xf32>
    %281 = vector.broadcast %6 : vector<1x40xf32> to vector<2x40xf32>
    %282 = arith.mulf %281, %260 : vector<2x40xf32>
    %283 = arith.addf %273, %282 : vector<2x40xf32>
    %284 = arith.mulf %283, %280 : vector<2x40xf32>
    %285 = vector.broadcast %7 : vector<1x40xf32> to vector<2x40xf32>
    %286 = arith.mulf %284, %285 : vector<2x40xf32>
    %cst_30 = arith.constant dense<0.000000e+00> : vector<2xf32>
    %287 = vector.multi_reduction <add>, %286, %cst_30 [1] : vector<2x40xf32> to vector<2xf32>
    %288 = vector.shape_cast %287 : vector<2xf32> to vector<2x1xf32>
    %289 = vector.broadcast %8 : vector<1x1xf32> to vector<2x1xf32>
    %290 = arith.addf %288, %289 : vector<2x1xf32>
    %c0_31 = arith.constant 0 : index
    %c0_32 = arith.constant 0 : index
    %291 = vector.load %arg6[%c0_31, %c0_32] : memref<2x1xf32, #tpu.memory_space<vmem>>, vector<2x1xf32>
    tpu.vector_store %arg6[%c0_31, %c0_32], %290 {strides = array<i32>} : memref<2x1xf32, #tpu.memory_space<vmem>>, vector<2x1xf32>,
    return
  }
}

</mosaic_0001>

<llo_original>
// kernel: tpu_custom_call.1
$region0: #{tpu_custom_call.1}
  #allocation0 [shape = 'u32[]', space=smem, size = 0x4, offset = 0x4, fixed_abs, tag = 'smem constant byte address 0x4 - core index']
  #allocation1 [shape = 'u32[72,128]{1,0:T(1,128)}', space=vmem, size = 0x9000, scoped, tag = 'internal scratch']
  %s0 = inlined_call_operand.vmem [shape: f32[8,2,20], index: 0, kind: input, shape index: {}]
  %s1 = inlined_call_operand.vmem [shape: f32[8,2,1], index: 1, kind: input, shape index: {}]
  %s2 = inlined_call_operand.hbm [shape: f32[16,128], index: 2, kind: input, shape index: {}]
  %s3 = inlined_call_operand.hbm [shape: f32[20,80], index: 3, kind: input, shape index: {}]
  %s4 = inlined_call_operand.hbm [shape: f32[40,168], index: 4, kind: input, shape index: {}]
  %s5 = inlined_call_operand.hbm [shape: f32[40,128], index: 5, kind: input, shape index: {}]
  %s6 = inlined_call_operand.vmem [shape: f32[2,1], index: 6, kind: output, shape index: {}]
  %s7 = sld [smem:[#allocation0]]
  $region50: #{tpu_custom_call.1} parent=0
    _
  %s9 = ssub.s32 1, %s7
  %s10 = scalar_select 0, %s9, %s7
  $region1: #{tpu_custom_call.1} parent=0
    #allocation2 [shape = 'u8[8192]{0}', space=vmem, size = 0x2000, scoped, tag = 'input window, operand 2, single buffered']
    #allocation3 [shape = 's32[1]{0}', space=sflag, size = 0x4, scoped, tag = 'scoped memory for tpu_custom_call.1']
    #allocation4 [shape = 'u8[12288]{0}', space=vmem, size = 0x3000, scoped, tag = 'input window, operand 3, single buffered']
    #allocation5 [shape = 's32[1]{0}', space=sflag, size = 0x4, scoped, tag = 'scoped memory for tpu_custom_call.1']
    #allocation6 [shape = 'u8[40960]{0}', space=vmem, size = 0xa000, scoped, tag = 'input window, operand 4, single buffered']
    #allocation7 [shape = 'u8[20480]{0}', space=vmem, size = 0x5000, scoped, tag = 'input window, operand 5, single buffered']
    #allocation8 [shape = 's32[1]{0}', space=sflag, size = 0x4, scoped, tag = 'scoped memory for tpu_custom_call.1']
    %11 = vsyncpa [#allocation3], 0
    %12 = vsyncpa [#allocation5], 0
    %13 = vsyncpa [#allocation8], 0
    // Predicated region
    $region2: #{tpu_custom_call.1} parent=1 // pred_check
      _
    $region3: #{tpu_custom_call.1} parent=1 // pred_check_branch
      %15 = sbr.rel (0) target = $region5
    $region4: #{tpu_custom_call.1} parent=1 // pred_region
      _
    $region5: #{tpu_custom_call.1} parent=1 // pred_fallthru
      _
    // Predicated region
    $region6: #{tpu_custom_call.1} parent=1 // pred_check
      _
    $region7: #{tpu_custom_call.1} parent=1 // pred_check_branch
      %17 = sbr.rel (0) target = $region9
    $region8: #{tpu_custom_call.1} parent=1 // pred_region
      _
    $region9: #{tpu_custom_call.1} parent=1 // pred_fallthru
      _
    // Predicated region
    $region10: #{tpu_custom_call.1} parent=1 // pred_check
      _
    $region11: #{tpu_custom_call.1} parent=1 // pred_check_branch
      %19 = sbr.rel (0) target = $region13
    $region12: #{tpu_custom_call.1} parent=1 // pred_region
      %21 = vsyncadd [#allocation3], 0
      %s22 = sshll.u32 %s2, 4
      %s23 = int_to_ptr.hbm [resolvable:$true] %s22
      %s24 = sshll.u32 [#allocation2], 4
      %s25 = int_to_ptr.vmem [resolvable:$true] %s24
      %30 = dma.hbm_to_vmem [thread:$0]  %s23, 256, %s25, [#allocation3], 128, 128, 8
    $region13: #{tpu_custom_call.1} parent=1 // pred_fallthru
      _
    // Predicated region
    $region14: #{tpu_custom_call.1} parent=1 // pred_check
      _
    $region15: #{tpu_custom_call.1} parent=1 // pred_check_branch
      %32 = sbr.rel (0) target = $region17
    $region16: #{tpu_custom_call.1} parent=1 // pred_region
      %34 = vsyncadd [#allocation5], 0
      %s35 = sshll.u32 %s3, 4
      %s36 = int_to_ptr.hbm [resolvable:$true] %s35
      %s37 = sshll.u32 [#allocation4], 4
      %s38 = int_to_ptr.vmem [resolvable:$true] %s37
      %43 = dma.hbm_to_vmem [thread:$0]  %s36, 384, %s38, [#allocation5], 128, 128, 8
    $region17: #{tpu_custom_call.1} parent=1 // pred_fallthru
      _
    // Predicated region
    $region18: #{tpu_custom_call.1} parent=1 // pred_check
      _
    $region19: #{tpu_custom_call.1} parent=1 // pred_check_branch
      %45 = sbr.rel (0) target = $region21
    $region20: #{tpu_custom_call.1} parent=1 // pred_region
      %47 = vsyncadd [#allocation5], 0
      %s48 = sshll.u32 %s4, 4
      %s49 = int_to_ptr.hbm [resolvable:$true] %s48
      %s50 = sshll.u32 [#allocation6], 4
      %s51 = int_to_ptr.vmem [resolvable:$true] %s50
      %56 = dma.hbm_to_vmem [thread:$0]  %s49, 1280, %s51, [#allocation5], 256, 256, 16
    $region21: #{tpu_custom_call.1} parent=1 // pred_fallthru
      _
    // Predicated region
    $region22: #{tpu_custom_call.1} parent=1 // pred_check
      _
    $region23: #{tpu_custom_call.1} parent=1 // pred_check_branch
      %58 = sbr.rel (0) target = $region25
    $region24: #{tpu_custom_call.1} parent=1 // pred_region
      %60 = vsyncadd [#allocation8], 0
      %s61 = sshll.u32 %s5, 4
      %s62 = int_to_ptr.hbm [resolvable:$true] %s61
      %s63 = sshll.u32 [#allocation7], 4
      %s64 = int_to_ptr.vmem [resolvable:$true] %s63
      %69 = dma.hbm_to_vmem [thread:$0]  %s62, 640, %s64, [#allocation8], 128, 128, 8
    $region25: #{tpu_custom_call.1} parent=1 // pred_fallthru
      _
    // Predicated region
    $region26: #{tpu_custom_call.1} parent=1 // pred_check
      _
    $region27: #{tpu_custom_call.1} parent=1 // pred_check_branch
      %71 = sbr.rel (0) target = $region29
    $region28: #{tpu_custom_call.1} parent=1 // pred_region
      %73 = dma.done [#allocation3], 256
    $region29: #{tpu_custom_call.1} parent=1 // pred_fallthru
      _
    // Predicated region
    $region30: #{tpu_custom_call.1} parent=1 // pred_check
      _
    $region31: #{tpu_custom_call.1} parent=1 // pred_check_branch
      %75 = sbr.rel (0) target = $region33
    $region32: #{tpu_custom_call.1} parent=1 // pred_region
      %77 = dma.done [#allocation5], 384
    $region33: #{tpu_custom_call.1} parent=1 // pred_fallthru
      _
    // Predicated region
    $region34: #{tpu_custom_call.1} parent=1 // pred_check
      _
    $region35: #{tpu_custom_call.1} parent=1 // pred_check_branch
      %79 = sbr.rel (0) target = $region37
    $region36: #{tpu_custom_call.1} parent=1 // pred_region
      %81 = dma.done [#allocation5], 1280
    $region37: #{tpu_custom_call.1} parent=1 // pred_fallthru
      _
    // Predicated region
    $region38: #{tpu_custom_call.1} parent=1 // pred_check
      _
    $region39: #{tpu_custom_call.1} parent=1 // pred_check_branch
      %83 = sbr.rel (0) target = $region41
    $region40: #{tpu_custom_call.1} parent=1 // pred_region
      %85 = dma.done [#allocation8], 640
    $region41: #{tpu_custom_call.1} parent=1 // pred_fallthru
      _
    %v86 = vld [vmem:[#allocation2] sm:$0xff]
    %v87 = vld [vmem:[#allocation2 + $0x8] sm:$0xff]
    %v88 = vld [vmem:[%s0] sm:$0x3]
    %v89 = vld [vmem:[%s0 + $0x2] sm:$0x3]
    %v90 = vld [vmem:[%s0 + $0x4] sm:$0x3]
    %v91 = vld [vmem:[%s0 + $0x6] sm:$0x3]
    %v92 = vld [vmem:[%s0 + $0x8] sm:$0x3]
    %v93 = vld [vmem:[%s0 + $0xa] sm:$0x3]
    %v94 = vld [vmem:[%s0 + $0xc] sm:$0x3]
    %v95 = vld [vmem:[%s0 + $0xe] sm:$0x3]
    %v96 = vld [vmem:[%s1] sm:$0x3]
    %v97 = vld [vmem:[%s1 + $0x2] sm:$0x3]
    %v98 = vld [vmem:[%s1 + $0x4] sm:$0x3]
    %v99 = vld [vmem:[%s1 + $0x6] sm:$0x3]
    %v100 = vld [vmem:[%s1 + $0x8] sm:$0x3]
    %v101 = vld [vmem:[%s1 + $0xa] sm:$0x3]
    %v102 = vld [vmem:[%s1 + $0xc] sm:$0x3]
    %v103 = vld [vmem:[%s1 + $0xe] sm:$0x3]
    %105 = vset.pattern.permute.xlu0 0
    %106 = vperm.xlu0 %105, %v96
    %v107 = vpop.permute.xlu0 %106
    %110 = vset.pattern.permute.xlu0 0
    %111 = vperm.xlu0 %110, %v97
    %v112 = vpop.permute.xlu0 %111
    %115 = vset.pattern.permute.xlu0 0
    %116 = vperm.xlu0 %115, %v98
    %v117 = vpop.permute.xlu0 %116
    %120 = vset.pattern.permute.xlu0 0
    %121 = vperm.xlu0 %120, %v99
    %v122 = vpop.permute.xlu0 %121
    %125 = vset.pattern.permute.xlu0 0
    %126 = vperm.xlu0 %125, %v100
    %v127 = vpop.permute.xlu0 %126
    %130 = vset.pattern.permute.xlu0 0
    %131 = vperm.xlu0 %130, %v101
    %v132 = vpop.permute.xlu0 %131
    %135 = vset.pattern.permute.xlu0 0
    %136 = vperm.xlu0 %135, %v102
    %v137 = vpop.permute.xlu0 %136
    %140 = vset.pattern.permute.xlu0 0
    %141 = vperm.xlu0 %140, %v103
    %v142 = vpop.permute.xlu0 %141
    %v144 = vperm.slane %v86, 0
    %v145 = vmul.f32 %v107, %v144
    %v146 = vmul.f32 %v112, %v144
    %v147 = vmul.f32 %v117, %v144
    %v148 = vmul.f32 %v122, %v144
    %v149 = vmul.f32 %v127, %v144
    %v150 = vmul.f32 %v132, %v144
    %v151 = vmul.f32 %v137, %v144
    %v152 = vmul.f32 %v142, %v144
    %v153 = vperm.slane %v86, 1
    %v154 = vadd.f32 %v145, %v153
    %v155 = vadd.f32 %v146, %v153
    %v156 = vadd.f32 %v147, %v153
    %v157 = vadd.f32 %v148, %v153
    %v158 = vadd.f32 %v149, %v153
    %v159 = vadd.f32 %v150, %v153
    %v160 = vadd.f32 %v151, %v153
    %v161 = vadd.f32 %v152, %v153
    %v162 = vld [vmem:[#allocation4] sm:$0xff]
    %v163 = vld [vmem:[#allocation4 + $0x8] sm:$0xff]
    %v164 = vld [vmem:[#allocation4 + $0x10] sm:$0xf]
    %181 = vst [vmem:[#allocation1] ss:$4 sm:$0xff] %v88
    %s182 = scalar_lea.vmem [#allocation1], 1
    %183 = vst [vmem:[%s182] ss:$4 sm:$0xff] %v154
    %s184 = scalar_lea.vmem [#allocation1], 2
    %185 = vst [vmem:[%s184] ss:$4 sm:$0xff] %v89
    %s186 = scalar_lea.vmem [#allocation1], 3
    %187 = vst [vmem:[%s186] ss:$4 sm:$0xff] %v155
    %s188 = scalar_lea.vmem [#allocation1], 32
    %189 = vst [vmem:[%s188] ss:$4 sm:$0xff] %v90
    %s190 = scalar_lea.vmem [#allocation1], 33
    %191 = vst [vmem:[%s190] ss:$4 sm:$0xff] %v156
    %s192 = scalar_lea.vmem [#allocation1], 34
    %193 = vst [vmem:[%s192] ss:$4 sm:$0xff] %v91
    %s194 = scalar_lea.vmem [#allocation1], 35
    %195 = vst [vmem:[%s194] ss:$4 sm:$0xff] %v157
    %v196 = vld.sshfl [vmem:[#allocation1] sm:$0xff pattern:$0x73625140]
    %v197 = vld.sshfl [vmem:[#allocation1 + $0x20] sm:$0xff pattern:$0x73625140]
    %198 = vst [vmem:[#allocation1] ss:$4 sm:$0xff] %v92
    %199 = vst [vmem:[%s182] ss:$4 sm:$0xff] %v158
    %200 = vst [vmem:[%s184] ss:$4 sm:$0xff] %v93
    %201 = vst [vmem:[%s186] ss:$4 sm:$0xff] %v159
    %202 = vst [vmem:[%s188] ss:$4 sm:$0xff] %v94
    %203 = vst [vmem:[%s190] ss:$4 sm:$0xff] %v160
    %204 = vst [vmem:[%s192] ss:$4 sm:$0xff] %v95
    %205 = vst [vmem:[%s194] ss:$4 sm:$0xff] %v161
    %v206 = vld.sshfl [vmem:[#allocation1] sm:$0xff pattern:$0x73625140]
    %v207 = vld.sshfl [vmem:[#allocation1 + $0x20] sm:$0xff pattern:$0x73625140]
    %vm208 = vcmask 162816
    %v209 = vsel %vm208, %v196, 0
    %v211 = vsel %vm208, %v197, 0
    %v213 = vsel %vm208, %v206, 0
    %v215 = vsel %vm208, %v207, 0
    %vm217 = vcmask 1043456
    %v219 = vsel %vm217, %v164, 0
    %221 = vmatpush.msra.mxu0 0.0
    %222 = vmatpush.msra.mxu0 0.0
    %223 = vmatpush.msra.mxu0 0.0
    %224 = vmatpush.msra.mxu0 0.0
    %225 = vmatpush.msra.mxu0 0.0
    %226 = vmatpush.msra.mxu0 0.0
    %227 = vmatpush.msra.mxu0 0.0
    %228 = vmatpush.msra.mxu0 0.0
    %229 = vmatpush.msra.mxu0 0.0
    %230 = vmatpush.msra.mxu0 0.0
    %231 = vmatpush.msra.mxu0 0.0
    %232 = vmatpush.msra.mxu0 0.0
    %233 = vmatpush.msra.mxu0 0.0
    %234 = vmatpush.msra.mxu0 %v219
    %235 = vmatpush.msra.mxu0 %v163
    %236 = vmatpush.msra.mxu0 %v162
    %237 = vmatmul.f32.gmra.mxu0 %v209
    %v238 = vpop.f32.mrf.mxu0
    %v239 = vadd.f32 0.0, %v238
    %240 = vmatmul.f32.gmra.mxu0 %v211
    %v241 = vpop.f32.mrf.mxu0
    %v242 = vadd.f32 0.0, %v241
    %243 = vmatmul.f32.gmra.mxu0 %v213
    %v244 = vpop.f32.mrf.mxu0
    %v245 = vadd.f32 0.0, %v244
    %246 = vmatmul.f32.gmra.mxu0 %v215
    %v247 = vpop.f32.mrf.mxu0
    %v248 = vadd.f32 0.0, %v247
    %249 = vdwg.mxu0
    %vm254 = vcmask 1045504
    %v255 = vrot.slane %v239, 2
    %v256 = vrot.slane %v242, 2
    %v257 = vsel %vm254, %v255, %v256
    %v258 = vrot.slane %v245, 2
    %v259 = vsel %vm254, %v256, %v258
    %v260 = vrot.slane %v248, 2
    %v261 = vsel %vm254, %v258, %v260
    %v267 = vsel %vm254, 0.0, %v255
    %v268 = vperm.slane %v86, 6
    %v269 = vperm.slane %v86, 2
    %v270 = vmul.f32 %v267, %v269
    %v271 = vmul.f32 %v257, %v269
    %v272 = vmul.f32 %v259, %v269
    %v273 = vmul.f32 %v261, %v269
    %v274 = vadd.f32 %v268, %v270
    %v275 = vadd.f32 %v268, %v271
    %v276 = vadd.f32 %v268, %v272
    %v277 = vadd.f32 %v268, %v273
    %v278 = vperm.slane %v86, 3
    %v279 = vmul.f32 %v267, %v278
    %v280 = vmul.f32 %v257, %v278
    %v281 = vmul.f32 %v259, %v278
    %v282 = vmul.f32 %v261, %v278
    %v283 = vmul.f32 %v260, %v278
    %v289 = vrot.slane %v279, 2
    %v290 = vrot.slane %v280, 2
    %v291 = vsel %vm254, %v289, %v290
    %v292 = vrot.slane %v281, 2
    %v293 = vsel %vm254, %v290, %v292
    %v294 = vrot.slane %v282, 2
    %v295 = vsel %vm254, %v292, %v294
    %v296 = vrot.slane %v283, 2
    %v297 = vsel %vm254, %v294, %v296
    %v302 = vadd.f32 %v274, %v291
    %v303 = vadd.f32 %v275, %v293
    %v304 = vadd.f32 %v276, %v295
    %v305 = vadd.f32 %v277, %v297
    %v306 = vperm.slane %v86, 4
    %v307 = vmul.f32 %v267, %v306
    %v308 = vmul.f32 %v257, %v306
    %v309 = vmul.f32 %v259, %v306
    %v310 = vmul.f32 %v261, %v306
    %v311 = vmul.f32 %v260, %v306
    %v317 = vrot.slane %v307, 4
    %v318 = vrot.slane %v308, 4
    %v319 = vsel %vm217, %v317, %v318
    %v320 = vrot.slane %v309, 4
    %v321 = vsel %vm217, %v318, %v320
    %v322 = vrot.slane %v310, 4
    %v323 = vsel %vm217, %v320, %v322
    %v324 = vrot.slane %v311, 4
    %v325 = vsel %vm217, %v322, %v324
    %v330 = vadd.f32 %v302, %v319
    %v331 = vadd.f32 %v303, %v321
    %v332 = vadd.f32 %v304, %v323
    %v333 = vadd.f32 %v305, %v325
    %v334 = vperm.slane %v86, 5
    %v335 = vmul.f32 %v267, %v334
    %v336 = vmul.f32 %v257, %v334
    %v337 = vmul.f32 %v259, %v334
    %v338 = vmul.f32 %v261, %v334
    %v339 = vmul.f32 %v260, %v334
    %vm345 = vcmask 1041408
    %v346 = vrot.slane %v335, 6
    %v347 = vrot.slane %v336, 6
    %v348 = vsel %vm345, %v346, %v347
    %v349 = vrot.slane %v337, 6
    %v350 = vsel %vm345, %v347, %v349
    %v351 = vrot.slane %v338, 6
    %v352 = vsel %vm345, %v349, %v351
    %v353 = vrot.slane %v339, 6
    %v354 = vsel %vm345, %v351, %v353
    %v359 = vadd.f32 %v330, %v348
    %v360 = vadd.f32 %v331, %v350
    %v361 = vadd.f32 %v332, %v352
    %v362 = vadd.f32 %v333, %v354
    %v363 = vsub.f32 0.0, %v359
    %v364 = vsub.f32 0.0, %v360
    %v365 = vsub.f32 0.0, %v361
    %v366 = vsub.f32 0.0, %v362
    %v367 = vmul.f32 %v363, 1.442695
    %v368 = vpow.pop %v367
    %v369 = vmul.f32 %v364, 1.442695
    %v370 = vpow.pop %v369
    %v371 = vmul.f32 %v365, 1.442695
    %v372 = vpow.pop %v371
    %v373 = vmul.f32 %v366, 1.442695
    %v374 = vpow.pop %v373
    %v375 = vadd.f32 %v368, 1.0
    %v376 = vadd.f32 %v370, 1.0
    %v377 = vadd.f32 %v372, 1.0
    %v378 = vadd.f32 %v374, 1.0
    %v379 = vrcp.pop %v375
    %v380 = vrcp.pop %v376
    %v381 = vrcp.pop %v377
    %v382 = vrcp.pop %v378
    %v383 = vmul.f32 %v359, %v379
    %v384 = vmul.f32 %v360, %v380
    %v385 = vmul.f32 %v361, %v381
    %v386 = vmul.f32 %v362, %v382
    %v387 = vld [vmem:[#allocation6] sm:$0xff]
    %v388 = vld [vmem:[#allocation6 + $0x8] sm:$0xff]
    %v389 = vld [vmem:[#allocation6 + $0x10] sm:$0xff]
    %v390 = vld [vmem:[#allocation6 + $0x18] sm:$0xff]
    %v391 = vld [vmem:[#allocation6 + $0x20] sm:$0xff]
    %v392 = vld [vmem:[#allocation6 + $0x28] sm:$0xff]
    %v393 = vld [vmem:[#allocation6 + $0x30] sm:$0xff]
    %v394 = vld [vmem:[#allocation6 + $0x38] sm:$0xff]
    %v395 = vld [vmem:[#allocation6 + $0x40] sm:$0xff]
    %v396 = vld [vmem:[#allocation6 + $0x48] sm:$0xff]
    %vm397 = vcmask 326656
    %v399 = vsel %vm397, %v383, 0
    %v402 = vsel %vm397, %v384, 0
    %v405 = vsel %vm397, %v385, 0
    %v408 = vsel %vm397, %v386, 0
    %410 = vmatpush.msra.mxu0 0.0
    %411 = vmatpush.msra.mxu0 0.0
    %412 = vmatpush.msra.mxu0 0.0
    %413 = vmatpush.msra.mxu0 0.0
    %414 = vmatpush.msra.mxu0 0.0
    %415 = vmatpush.msra.mxu0 0.0
    %416 = vmatpush.msra.mxu0 0.0
    %417 = vmatpush.msra.mxu0 0.0
    %418 = vmatpush.msra.mxu0 0.0
    %419 = vmatpush.msra.mxu0 0.0
    %420 = vmatpush.msra.mxu0 0.0
    %421 = vmatpush.msra.mxu0 %v395
    %422 = vmatpush.msra.mxu0 %v393
    %423 = vmatpush.msra.mxu0 %v391
    %424 = vmatpush.msra.mxu0 %v389
    %425 = vmatpush.msra.mxu0 %v387
    %426 = vmatmul.f32.gmra.mxu0 %v399
    %v427 = vpop.f32.mrf.mxu0
    %v428 = vadd.f32 0.0, %v427
    %429 = vmatmul.f32.gmra.mxu0 %v402
    %v430 = vpop.f32.mrf.mxu0
    %v431 = vadd.f32 0.0, %v430
    %432 = vmatmul.f32.gmra.mxu0 %v405
    %v433 = vpop.f32.mrf.mxu0
    %v434 = vadd.f32 0.0, %v433
    %435 = vmatmul.f32.gmra.mxu0 %v408
    %v436 = vpop.f32.mrf.mxu0
    %v437 = vadd.f32 0.0, %v436
    %438 = vdwg.mxu0
    %439 = vmatpush.msra.mxu0 0.0
    %440 = vmatpush.msra.mxu0 0.0
    %441 = vmatpush.msra.mxu0 0.0
    %442 = vmatpush.msra.mxu0 0.0
    %443 = vmatpush.msra.mxu0 0.0
    %444 = vmatpush.msra.mxu0 0.0
    %445 = vmatpush.msra.mxu0 0.0
    %446 = vmatpush.msra.mxu0 0.0
    %447 = vmatpush.msra.mxu0 0.0
    %448 = vmatpush.msra.mxu0 0.0
    %449 = vmatpush.msra.mxu0 0.0
    %450 = vmatpush.msra.mxu0 %v396
    %451 = vmatpush.msra.mxu0 %v394
    %452 = vmatpush.msra.mxu0 %v392
    %453 = vmatpush.msra.mxu0 %v390
    %454 = vmatpush.msra.mxu0 %v388
    %455 = vmatmul.f32.gmra.mxu0 %v399
    %v456 = vpop.f32.mrf.mxu0
    %v457 = vadd.f32 0.0, %v456
    %458 = vmatmul.f32.gmra.mxu0 %v402
    %v459 = vpop.f32.mrf.mxu0
    %v460 = vadd.f32 0.0, %v459
    %461 = vmatmul.f32.gmra.mxu0 %v405
    %v462 = vpop.f32.mrf.mxu0
    %v463 = vadd.f32 0.0, %v462
    %464 = vmatmul.f32.gmra.mxu0 %v408
    %v465 = vpop.f32.mrf.mxu0
    %v466 = vadd.f32 0.0, %v465
    %467 = vdwg.mxu0
    %v468 = vperm.slane %v86, 7
    %v469 = vadd.f32 %v457, %v468
    %v470 = vadd.f32 %v460, %v468
    %v471 = vadd.f32 %v463, %v468
    %v472 = vadd.f32 %v466, %v468
    %vm473 = vcmp.gt.f32.partialorder %v469, 20.0
    %vm474 = vcmp.gt.f32.partialorder %v470, 20.0
    %vm475 = vcmp.gt.f32.partialorder %v471, 20.0
    %vm476 = vcmp.gt.f32.partialorder %v472, 20.0
    %v477 = vmin.f32 %v469, 20.0
    %v478 = vmin.f32 %v470, 20.0
    %v479 = vmin.f32 %v471, 20.0
    %v480 = vmin.f32 %v472, 20.0
    %v481 = vmul.f32 %v477, 1.442695
    %v482 = vpow.pop %v481
    %v483 = vmul.f32 %v478, 1.442695
    %v484 = vpow.pop %v483
    %v485 = vmul.f32 %v479, 1.442695
    %v486 = vpow.pop %v485
    %v487 = vmul.f32 %v480, 1.442695
    %v488 = vpow.pop %v487
    %v489 = vadd.f32 %v482, 1.0
    %v490 = vadd.f32 %v484, 1.0
    %v491 = vadd.f32 %v486, 1.0
    %v492 = vadd.f32 %v488, 1.0
    %v493 = vlog2.pop %v489
    %v494 = vmul.f32 %v493, 0.6931472
    %v495 = vlog2.pop %v490
    %v496 = vmul.f32 %v495, 0.6931472
    %v497 = vlog2.pop %v491
    %v498 = vmul.f32 %v497, 0.6931472
    %v499 = vlog2.pop %v492
    %v500 = vmul.f32 %v499, 0.6931472
    %v501 = vsel %vm473, %v469, %v494
    %v502 = vsel %vm474, %v470, %v496
    %v503 = vsel %vm475, %v471, %v498
    %v504 = vsel %vm476, %v472, %v500
    %v505 = vmul.f32 %v501, %v383
    %v506 = vmul.f32 %v502, %v384
    %v507 = vmul.f32 %v503, %v385
    %v508 = vmul.f32 %v504, %v386
    %v509 = vlaneseq
    %v510 = vand.u32 %v509, 127
    %v511 = vadd.s32 %v510, 128
    %v512 = vadd.s32 %v510, 256
    %v513 = vadd.s32 %v510, 384
    %v514 = vadd.s32 %v510, 512
    %v515 = vadd.s32 %v510, 640
    %v516 = vadd.s32 %v510, 768
    %v517 = vadd.s32 %v510, 896
    %v518 = vadd.s32 %v510, 1024
    %v519 = vadd.s32 %v510, 1152
    %v520 = vadd.s32 %v510, 1280
    %v521 = vadd.s32 %v510, 1408
    %v522 = vadd.s32 %v510, 1536
    %v523 = vadd.s32 %v510, 1664
    %v524 = vadd.s32 %v510, 1792
    %v525 = vadd.s32 %v510, 1920
    %v526 = vlaneseq
    %v527 = vshrl.u32 %v526, 7
    %v528 = vadd.s32 %v527, 8
    %v529 = vadd.s32 %v527, 16
    %v530 = vadd.s32 %v527, 24
    %v531 = vmul.u32 %v527, 64
    %v532 = vmul.u32 %v528, 64
    %v533 = vmul.u32 %v529, 64
    %v534 = vmul.u32 %v530, 64
    %vm535 = vcmp.ge.s32.totalorder %v510, %v531
    %vm536 = vcmp.ge.s32.totalorder %v511, %v531
    %vm537 = vcmp.ge.s32.totalorder %v512, %v531
    %vm538 = vcmp.ge.s32.totalorder %v513, %v531
    %vm539 = vcmp.ge.s32.totalorder %v514, %v531
    %vm540 = vcmp.ge.s32.totalorder %v515, %v531
    %vm541 = vcmp.ge.s32.totalorder %v516, %v531
    %vm542 = vcmp.ge.s32.totalorder %v517, %v531
    %vm543 = vcmp.ge.s32.totalorder %v518, %v531
    %vm544 = vcmp.ge.s32.totalorder %v519, %v531
    %vm545 = vcmp.ge.s32.totalorder %v520, %v531
    %vm546 = vcmp.ge.s32.totalorder %v521, %v531
    %vm547 = vcmp.ge.s32.totalorder %v522, %v531
    %vm548 = vcmp.ge.s32.totalorder %v523, %v531
    %vm549 = vcmp.ge.s32.totalorder %v524, %v531
    %vm550 = vcmp.ge.s32.totalorder %v525, %v531
    %vm551 = vcmp.ge.s32.totalorder %v510, %v532
    %vm552 = vcmp.ge.s32.totalorder %v511, %v532
    %vm553 = vcmp.ge.s32.totalorder %v512, %v532
    %vm554 = vcmp.ge.s32.totalorder %v513, %v532
    %vm555 = vcmp.ge.s32.totalorder %v514, %v532
    %vm556 = vcmp.ge.s32.totalorder %v515, %v532
    %vm557 = vcmp.ge.s32.totalorder %v516, %v532
    %vm558 = vcmp.ge.s32.totalorder %v517, %v532
    %vm559 = vcmp.ge.s32.totalorder %v518, %v532
    %vm560 = vcmp.ge.s32.totalorder %v519, %v532
    %vm561 = vcmp.ge.s32.totalorder %v520, %v532
    %vm562 = vcmp.ge.s32.totalorder %v521, %v532
    %vm563 = vcmp.ge.s32.totalorder %v522, %v532
    %vm564 = vcmp.ge.s32.totalorder %v523, %v532
    %vm565 = vcmp.ge.s32.totalorder %v524, %v532
    %vm566 = vcmp.ge.s32.totalorder %v525, %v532
    %vm567 = vcmp.ge.s32.totalorder %v510, %v533
    %vm568 = vcmp.ge.s32.totalorder %v511, %v533
    %vm569 = vcmp.ge.s32.totalorder %v512, %v533
    %vm570 = vcmp.ge.s32.totalorder %v513, %v533
    %vm571 = vcmp.ge.s32.totalorder %v514, %v533
    %vm572 = vcmp.ge.s32.totalorder %v515, %v533
    %vm573 = vcmp.ge.s32.totalorder %v516, %v533
    %vm574 = vcmp.ge.s32.totalorder %v517, %v533
    %vm575 = vcmp.ge.s32.totalorder %v518, %v533
    %vm576 = vcmp.ge.s32.totalorder %v519, %v533
    %vm577 = vcmp.ge.s32.totalorder %v520, %v533
    %vm578 = vcmp.ge.s32.totalorder %v521, %v533
    %vm579 = vcmp.ge.s32.totalorder %v522, %v533
    %vm580 = vcmp.ge.s32.totalorder %v523, %v533
    %vm581 = vcmp.ge.s32.totalorder %v524, %v533
    %vm582 = vcmp.ge.s32.totalorder %v525, %v533
    %vm583 = vcmp.ge.s32.totalorder %v510, %v534
    %vm584 = vcmp.ge.s32.totalorder %v511, %v534
    %vm585 = vcmp.ge.s32.totalorder %v512, %v534
    %vm586 = vcmp.ge.s32.totalorder %v513, %v534
    %vm587 = vcmp.ge.s32.totalorder %v514, %v534
    %vm588 = vcmp.ge.s32.totalorder %v515, %v534
    %vm589 = vcmp.ge.s32.totalorder %v516, %v534
    %vm590 = vcmp.ge.s32.totalorder %v517, %v534
    %vm591 = vcmp.ge.s32.totalorder %v518, %v534
    %vm592 = vcmp.ge.s32.totalorder %v519, %v534
    %vm593 = vcmp.ge.s32.totalorder %v520, %v534
    %vm594 = vcmp.ge.s32.totalorder %v521, %v534
    %vm595 = vcmp.ge.s32.totalorder %v522, %v534
    %vm596 = vcmp.ge.s32.totalorder %v523, %v534
    %vm597 = vcmp.ge.s32.totalorder %v524, %v534
    %vm598 = vcmp.ge.s32.totalorder %v525, %v534
    %v599 = vadd.s32 %v527, 1
    %v600 = vadd.s32 %v528, 1
    %v601 = vadd.s32 %v529, 1
    %v602 = vadd.s32 %v530, 1
    %v603 = vmul.u32 %v599, 64
    %v604 = vmul.u32 %v600, 64
    %v605 = vmul.u32 %v601, 64
    %v606 = vmul.u32 %v602, 64
    %vm607 = vcmp.lt.s32.totalorder %v510, %v603
    %vm608 = vcmp.lt.s32.totalorder %v511, %v603
    %vm609 = vcmp.lt.s32.totalorder %v512, %v603
    %vm610 = vcmp.lt.s32.totalorder %v513, %v603
    %vm611 = vcmp.lt.s32.totalorder %v514, %v603
    %vm612 = vcmp.lt.s32.totalorder %v515, %v603
    %vm613 = vcmp.lt.s32.totalorder %v516, %v603
    %vm614 = vcmp.lt.s32.totalorder %v517, %v603
    %vm615 = vcmp.lt.s32.totalorder %v518, %v603
    %vm616 = vcmp.lt.s32.totalorder %v519, %v603
    %vm617 = vcmp.lt.s32.totalorder %v520, %v603
    %vm618 = vcmp.lt.s32.totalorder %v521, %v603
    %vm619 = vcmp.lt.s32.totalorder %v522, %v603
    %vm620 = vcmp.lt.s32.totalorder %v523, %v603
    %vm621 = vcmp.lt.s32.totalorder %v524, %v603
    %vm622 = vcmp.lt.s32.totalorder %v525, %v603
    %vm623 = vcmp.lt.s32.totalorder %v510, %v604
    %vm624 = vcmp.lt.s32.totalorder %v511, %v604
    %vm625 = vcmp.lt.s32.totalorder %v512, %v604
    %vm626 = vcmp.lt.s32.totalorder %v513, %v604
    %vm627 = vcmp.lt.s32.totalorder %v514, %v604
    %vm628 = vcmp.lt.s32.totalorder %v515, %v604
    %vm629 = vcmp.lt.s32.totalorder %v516, %v604
    %vm630 = vcmp.lt.s32.totalorder %v517, %v604
    %vm631 = vcmp.lt.s32.totalorder %v518, %v604
    %vm632 = vcmp.lt.s32.totalorder %v519, %v604
    %vm633 = vcmp.lt.s32.totalorder %v520, %v604
    %vm634 = vcmp.lt.s32.totalorder %v521, %v604
    %vm635 = vcmp.lt.s32.totalorder %v522, %v604
    %vm636 = vcmp.lt.s32.totalorder %v523, %v604
    %vm637 = vcmp.lt.s32.totalorder %v524, %v604
    %vm638 = vcmp.lt.s32.totalorder %v525, %v604
    %vm639 = vcmp.lt.s32.totalorder %v510, %v605
    %vm640 = vcmp.lt.s32.totalorder %v511, %v605
    %vm641 = vcmp.lt.s32.totalorder %v512, %v605
    %vm642 = vcmp.lt.s32.totalorder %v513, %v605
    %vm643 = vcmp.lt.s32.totalorder %v514, %v605
    %vm644 = vcmp.lt.s32.totalorder %v515, %v605
    %vm645 = vcmp.lt.s32.totalorder %v516, %v605
    %vm646 = vcmp.lt.s32.totalorder %v517, %v605
    %vm647 = vcmp.lt.s32.totalorder %v518, %v605
    %vm648 = vcmp.lt.s32.totalorder %v519, %v605
    %vm649 = vcmp.lt.s32.totalorder %v520, %v605
    %vm650 = vcmp.lt.s32.totalorder %v521, %v605
    %vm651 = vcmp.lt.s32.totalorder %v522, %v605
    %vm652 = vcmp.lt.s32.totalorder %v523, %v605
    %vm653 = vcmp.lt.s32.totalorder %v524, %v605
    %vm654 = vcmp.lt.s32.totalorder %v525, %v605
    %vm655 = vcmp.lt.s32.totalorder %v510, %v606
    %vm656 = vcmp.lt.s32.totalorder %v511, %v606
    %vm657 = vcmp.lt.s32.totalorder %v512, %v606
    %vm658 = vcmp.lt.s32.totalorder %v513, %v606
    %vm659 = vcmp.lt.s32.totalorder %v514, %v606
    %vm660 = vcmp.lt.s32.totalorder %v515, %v606
    %vm661 = vcmp.lt.s32.totalorder %v516, %v606
    %vm662 = vcmp.lt.s32.totalorder %v517, %v606
    %vm663 = vcmp.lt.s32.totalorder %v518, %v606
    %vm664 = vcmp.lt.s32.totalorder %v519, %v606
    %vm665 = vcmp.lt.s32.totalorder %v520, %v606
    %vm666 = vcmp.lt.s32.totalorder %v521, %v606
    %vm667 = vcmp.lt.s32.totalorder %v522, %v606
    %vm668 = vcmp.lt.s32.totalorder %v523, %v606
    %vm669 = vcmp.lt.s32.totalorder %v524, %v606
    %vm670 = vcmp.lt.s32.totalorder %v525, %v606
    %vm671 = vmand %vm535, %vm607
    %vm672 = vmand %vm536, %vm608
    %vm673 = vmand %vm537, %vm609
    %vm674 = vmand %vm538, %vm610
    %vm675 = vmand %vm539, %vm611
    %vm676 = vmand %vm540, %vm612
    %vm677 = vmand %vm541, %vm613
    %vm678 = vmand %vm542, %vm614
    %vm679 = vmand %vm543, %vm615
    %vm680 = vmand %vm544, %vm616
    %vm681 = vmand %vm545, %vm617
    %vm682 = vmand %vm546, %vm618
    %vm683 = vmand %vm547, %vm619
    %vm684 = vmand %vm548, %vm620
    %vm685 = vmand %vm549, %vm621
    %vm686 = vmand %vm550, %vm622
    %vm687 = vmand %vm551, %vm623
    %vm688 = vmand %vm552, %vm624
    %vm689 = vmand %vm553, %vm625
    %vm690 = vmand %vm554, %vm626
    %vm691 = vmand %vm555, %vm627
    %vm692 = vmand %vm556, %vm628
    %vm693 = vmand %vm557, %vm629
    %vm694 = vmand %vm558, %vm630
    %vm695 = vmand %vm559, %vm631
    %vm696 = vmand %vm560, %vm632
    %vm697 = vmand %vm561, %vm633
    %vm698 = vmand %vm562, %vm634
    %vm699 = vmand %vm563, %vm635
    %vm700 = vmand %vm564, %vm636
    %vm701 = vmand %vm565, %vm637
    %vm702 = vmand %vm566, %vm638
    %vm703 = vmand %vm567, %vm639
    %vm704 = vmand %vm568, %vm640
    %vm705 = vmand %vm569, %vm641
    %vm706 = vmand %vm570, %vm642
    %vm707 = vmand %vm571, %vm643
    %vm708 = vmand %vm572, %vm644
    %vm709 = vmand %vm573, %vm645
    %vm710 = vmand %vm574, %vm646
    %vm711 = vmand %vm575, %vm647
    %vm712 = vmand %vm576, %vm648
    %vm713 = vmand %vm577, %vm649
    %vm714 = vmand %vm578, %vm650
    %vm715 = vmand %vm579, %vm651
    %vm716 = vmand %vm580, %vm652
    %vm717 = vmand %vm581, %vm653
    %vm718 = vmand %vm582, %vm654
    %vm719 = vmand %vm583, %vm655
    %vm720 = vmand %vm584, %vm656
    %vm721 = vmand %vm585, %vm657
    %vm722 = vmand %vm586, %vm658
    %vm723 = vmand %vm587, %vm659
    %vm724 = vmand %vm588, %vm660
    %vm725 = vmand %vm589, %vm661
    %vm726 = vmand %vm590, %vm662
    %vm727 = vmand %vm591, %vm663
    %vm728 = vmand %vm592, %vm664
    %vm729 = vmand %vm593, %vm665
    %vm730 = vmand %vm594, %vm666
    %vm731 = vmand %vm595, %vm667
    %vm732 = vmand %vm596, %vm668
    %vm733 = vmand %vm597, %vm669
    %vm734 = vmand %vm598, %vm670
    %v735 = vsel %vm671, 1, 0
    %v736 = vsel %vm672, 1, 0
    %v737 = vsel %vm673, 1, 0
    %v738 = vsel %vm674, 1, 0
    %v739 = vsel %vm675, 1, 0
    %v740 = vsel %vm676, 1, 0
    %v741 = vsel %vm677, 1, 0
    %v742 = vsel %vm678, 1, 0
    %v743 = vsel %vm679, 1, 0
    %v744 = vsel %vm680, 1, 0
    %v745 = vsel %vm681, 1, 0
    %v746 = vsel %vm682, 1, 0
    %v747 = vsel %vm683, 1, 0
    %v748 = vsel %vm684, 1, 0
    %v749 = vsel %vm685, 1, 0
    %v750 = vsel %vm686, 1, 0
    %v751 = vsel %vm687, 1, 0
    %v752 = vsel %vm688, 1, 0
    %v753 = vsel %vm689, 1, 0
    %v754 = vsel %vm690, 1, 0
    %v755 = vsel %vm691, 1, 0
    %v756 = vsel %vm692, 1, 0
    %v757 = vsel %vm693, 1, 0
    %v758 = vsel %vm694, 1, 0
    %v759 = vsel %vm695, 1, 0
    %v760 = vsel %vm696, 1, 0
    %v761 = vsel %vm697, 1, 0
    %v762 = vsel %vm698, 1, 0
    %v763 = vsel %vm699, 1, 0
    %v764 = vsel %vm700, 1, 0
    %v765 = vsel %vm701, 1, 0
    %v766 = vsel %vm702, 1, 0
    %v767 = vsel %vm703, 1, 0
    %v768 = vsel %vm704, 1, 0
    %v769 = vsel %vm705, 1, 0
    %v770 = vsel %vm706, 1, 0
    %v771 = vsel %vm707, 1, 0
    %v772 = vsel %vm708, 1, 0
    %v773 = vsel %vm709, 1, 0
    %v774 = vsel %vm710, 1, 0
    %v775 = vsel %vm711, 1, 0
    %v776 = vsel %vm712, 1, 0
    %v777 = vsel %vm713, 1, 0
    %v778 = vsel %vm714, 1, 0
    %v779 = vsel %vm715, 1, 0
    %v780 = vsel %vm716, 1, 0
    %v781 = vsel %vm717, 1, 0
    %v782 = vsel %vm718, 1, 0
    %v783 = vsel %vm719, 1, 0
    %v784 = vsel %vm720, 1, 0
    %v785 = vsel %vm721, 1, 0
    %v786 = vsel %vm722, 1, 0
    %v787 = vsel %vm723, 1, 0
    %v788 = vsel %vm724, 1, 0
    %v789 = vsel %vm725, 1, 0
    %v790 = vsel %vm726, 1, 0
    %v791 = vsel %vm727, 1, 0
    %v792 = vsel %vm728, 1, 0
    %v793 = vsel %vm729, 1, 0
    %v794 = vsel %vm730, 1, 0
    %v795 = vsel %vm731, 1, 0
    %v796 = vsel %vm732, 1, 0
    %v797 = vsel %vm733, 1, 0
    %v798 = vsel %vm734, 1, 0
    %v799 = vcvt.s32.f32 %v735
    %v800 = vcvt.s32.f32 %v736
    %v801 = vcvt.s32.f32 %v737
    %v802 = vcvt.s32.f32 %v738
    %v803 = vcvt.s32.f32 %v739
    %v804 = vcvt.s32.f32 %v740
    %v805 = vcvt.s32.f32 %v741
    %v806 = vcvt.s32.f32 %v742
    %v807 = vcvt.s32.f32 %v743
    %v808 = vcvt.s32.f32 %v744
    %v809 = vcvt.s32.f32 %v745
    %v810 = vcvt.s32.f32 %v746
    %v811 = vcvt.s32.f32 %v747
    %v812 = vcvt.s32.f32 %v748
    %v813 = vcvt.s32.f32 %v749
    %v814 = vcvt.s32.f32 %v750
    %v815 = vcvt.s32.f32 %v751
    %v816 = vcvt.s32.f32 %v752
    %v817 = vcvt.s32.f32 %v753
    %v818 = vcvt.s32.f32 %v754
    %v819 = vcvt.s32.f32 %v755
    %v820 = vcvt.s32.f32 %v756
    %v821 = vcvt.s32.f32 %v757
    %v822 = vcvt.s32.f32 %v758
    %v823 = vcvt.s32.f32 %v759
    %v824 = vcvt.s32.f32 %v760
    %v825 = vcvt.s32.f32 %v761
    %v826 = vcvt.s32.f32 %v762
    %v827 = vcvt.s32.f32 %v763
    %v828 = vcvt.s32.f32 %v764
    %v829 = vcvt.s32.f32 %v765
    %v830 = vcvt.s32.f32 %v766
    %v831 = vcvt.s32.f32 %v767
    %v832 = vcvt.s32.f32 %v768
    %v833 = vcvt.s32.f32 %v769
    %v834 = vcvt.s32.f32 %v770
    %v835 = vcvt.s32.f32 %v771
    %v836 = vcvt.s32.f32 %v772
    %v837 = vcvt.s32.f32 %v773
    %v838 = vcvt.s32.f32 %v774
    %v839 = vcvt.s32.f32 %v775
    %v840 = vcvt.s32.f32 %v776
    %v841 = vcvt.s32.f32 %v777
    %v842 = vcvt.s32.f32 %v778
    %v843 = vcvt.s32.f32 %v779
    %v844 = vcvt.s32.f32 %v780
    %v845 = vcvt.s32.f32 %v781
    %v846 = vcvt.s32.f32 %v782
    %v847 = vcvt.s32.f32 %v783
    %v848 = vcvt.s32.f32 %v784
    %v849 = vcvt.s32.f32 %v785
    %v850 = vcvt.s32.f32 %v786
    %v851 = vcvt.s32.f32 %v787
    %v852 = vcvt.s32.f32 %v788
    %v853 = vcvt.s32.f32 %v789
    %v854 = vcvt.s32.f32 %v790
    %v855 = vcvt.s32.f32 %v791
    %v856 = vcvt.s32.f32 %v792
    %v857 = vcvt.s32.f32 %v793
    %v858 = vcvt.s32.f32 %v794
    %v859 = vcvt.s32.f32 %v795
    %v860 = vcvt.s32.f32 %v796
    %v861 = vcvt.s32.f32 %v797
    %v862 = vcvt.s32.f32 %v798
    %867 = vrot.lane.b32.xlu0 %v505, 40
    %v868 = vpop.permute.xlu0 %867
    %869 = vrot.lane.b32.xlu0 %v506, 40
    %v870 = vpop.permute.xlu0 %869
    %871 = vrot.lane.b32.xlu0 %v507, 40
    %v872 = vpop.permute.xlu0 %871
    %873 = vrot.lane.b32.xlu0 %v508, 40
    %v874 = vpop.permute.xlu0 %873
    %v879 = vsel %vm397, %v501, %v868
    %v880 = vsel %vm397, %v502, %v870
    %v881 = vsel %vm397, %v503, %v872
    %v882 = vsel %vm397, %v504, %v874
    %883 = vxpose.xlu0.b32.start [1/16] %v879, 128
    %884 = vxpose.xlu0.b32.cont [2/16] %v880, 128
    %885 = vxpose.xlu0.b32.cont [3/16] %v881, 128
    %886 = vxpose.xlu0.b32.cont [4/16] %v882, 128
    %887 = vxpose.xlu0.b32.cont [5/16] 0.0, 128
    %888 = vxpose.xlu0.b32.cont [6/16] 0.0, 128
    %889 = vxpose.xlu0.b32.cont [7/16] 0.0, 128
    %890 = vxpose.xlu0.b32.cont [8/16] 0.0, 128
    %891 = vxpose.xlu0.b32.cont [9/16] 0.0, 128
    %892 = vxpose.xlu0.b32.cont [10/16] 0.0, 128
    %893 = vxpose.xlu0.b32.cont [11/16] 0.0, 128
    %894 = vxpose.xlu0.b32.cont [12/16] 0.0, 128
    %895 = vxpose.xlu0.b32.cont [13/16] 0.0, 128
    %896 = vxpose.xlu0.b32.cont [14/16] 0.0, 128
    %897 = vxpose.xlu0.b32.cont [15/16] 0.0, 128
    %898 = vxpose.xlu0.b32.end [16/16] 0.0, 128
    %v899 = vpop.trf.xlu0
    %v900 = vpop.trf.xlu0
    %v901 = vpop.trf.xlu0
    %v902 = vpop.trf.xlu0
    %v903 = vpop.trf.xlu0
    %v904 = vpop.trf.xlu0
    %v905 = vpop.trf.xlu0
    %v906 = vpop.trf.xlu0
    %v907 = vpop.trf.xlu0
    %v908 = vpop.trf.xlu0
    %v909 = vpop.trf.xlu0
    %v910 = vpop.trf.xlu0
    %v911 = vpop.trf.xlu0
    %v912 = vpop.trf.xlu0
    %v913 = vpop.trf.xlu0
    %v914 = vpop.trf.xlu0
    %vm915 = vcmask 261120
    %v917 = vsel %vm915, %v899, 0
    %v920 = vsel %vm915, %v900, 0
    %v923 = vsel %vm915, %v901, 0
    %v926 = vsel %vm915, %v902, 0
    %v929 = vsel %vm915, %v903, 0
    %v932 = vsel %vm915, %v904, 0
    %v935 = vsel %vm915, %v905, 0
    %v938 = vsel %vm915, %v906, 0
    %v941 = vsel %vm915, %v907, 0
    %v944 = vsel %vm915, %v908, 0
    %946 = vmatpush.msra.mxu0 0.0
    %947 = vmatpush.msra.mxu0 0.0
    %948 = vmatpush.msra.mxu0 0.0
    %949 = vmatpush.msra.mxu0 0.0
    %950 = vmatpush.msra.mxu0 0.0
    %951 = vmatpush.msra.mxu0 0.0
    %952 = vmatpush.msra.mxu0 0.0
    %953 = vmatpush.msra.mxu0 0.0
    %954 = vmatpush.msra.mxu0 0.0
    %955 = vmatpush.msra.mxu0 0.0
    %956 = vmatpush.msra.mxu0 0.0
    %957 = vmatpush.msra.mxu0 0.0
    %958 = vmatpush.msra.mxu0 %v847
    %959 = vmatpush.msra.mxu0 %v831
    %960 = vmatpush.msra.mxu0 %v815
    %961 = vmatpush.msra.mxu0 %v799
    %962 = vmatmul.f32.gmra.mxu0 %v917
    %v963 = vpop.f32.mrf.mxu0
    %v964 = vadd.f32 0.0, %v963
    %965 = vmatmul.f32.gmra.mxu0 %v920
    %v966 = vpop.f32.mrf.mxu0
    %v967 = vadd.f32 0.0, %v966
    %968 = vmatmul.f32.gmra.mxu0 %v923
    %v969 = vpop.f32.mrf.mxu0
    %v970 = vadd.f32 0.0, %v969
    %971 = vmatmul.f32.gmra.mxu0 %v926
    %v972 = vpop.f32.mrf.mxu0
    %v973 = vadd.f32 0.0, %v972
    %974 = vmatmul.f32.gmra.mxu0 %v929
    %v975 = vpop.f32.mrf.mxu0
    %v976 = vadd.f32 0.0, %v975
    %977 = vmatmul.f32.gmra.mxu0 %v932
    %v978 = vpop.f32.mrf.mxu0
    %v979 = vadd.f32 0.0, %v978
    %980 = vmatmul.f32.gmra.mxu0 %v935
    %v981 = vpop.f32.mrf.mxu0
    %v982 = vadd.f32 0.0, %v981
    %983 = vmatmul.f32.gmra.mxu0 %v938
    %v984 = vpop.f32.mrf.mxu0
    %v985 = vadd.f32 0.0, %v984
    %986 = vmatmul.f32.gmra.mxu0 %v941
    %v987 = vpop.f32.mrf.mxu0
    %v988 = vadd.f32 0.0, %v987
    %989 = vmatmul.f32.gmra.mxu0 %v944
    %v990 = vpop.f32.mrf.mxu0
    %v991 = vadd.f32 0.0, %v990
    %992 = vdwg.mxu0
    %993 = vmatpush.msra.mxu0 0.0
    %994 = vmatpush.msra.mxu0 0.0
    %995 = vmatpush.msra.mxu0 0.0
    %996 = vmatpush.msra.mxu0 0.0
    %997 = vmatpush.msra.mxu0 0.0
    %998 = vmatpush.msra.mxu0 0.0
    %999 = vmatpush.msra.mxu0 0.0
    %1000 = vmatpush.msra.mxu0 0.0
    %1001 = vmatpush.msra.mxu0 0.0
    %1002 = vmatpush.msra.mxu0 0.0
    %1003 = vmatpush.msra.mxu0 0.0
    %1004 = vmatpush.msra.mxu0 0.0
    %1005 = vmatpush.msra.mxu0 %v848
    %1006 = vmatpush.msra.mxu0 %v832
    %1007 = vmatpush.msra.mxu0 %v816
    %1008 = vmatpush.msra.mxu0 %v800
    %1009 = vmatmul.f32.gmra.mxu0 %v917
    %v1010 = vpop.f32.mrf.mxu0
    %v1011 = vadd.f32 0.0, %v1010
    %1012 = vmatmul.f32.gmra.mxu0 %v920
    %v1013 = vpop.f32.mrf.mxu0
    %v1014 = vadd.f32 0.0, %v1013
    %1015 = vmatmul.f32.gmra.mxu0 %v923
    %v1016 = vpop.f32.mrf.mxu0
    %v1017 = vadd.f32 0.0, %v1016
    %1018 = vmatmul.f32.gmra.mxu0 %v926
    %v1019 = vpop.f32.mrf.mxu0
    %v1020 = vadd.f32 0.0, %v1019
    %1021 = vmatmul.f32.gmra.mxu0 %v929
    %v1022 = vpop.f32.mrf.mxu0
    %v1023 = vadd.f32 0.0, %v1022
    %1024 = vmatmul.f32.gmra.mxu0 %v932
    %v1025 = vpop.f32.mrf.mxu0
    %v1026 = vadd.f32 0.0, %v1025
    %1027 = vmatmul.f32.gmra.mxu0 %v935
    %v1028 = vpop.f32.mrf.mxu0
    %v1029 = vadd.f32 0.0, %v1028
    %1030 = vmatmul.f32.gmra.mxu0 %v938
    %v1031 = vpop.f32.mrf.mxu0
    %v1032 = vadd.f32 0.0, %v1031
    %1033 = vmatmul.f32.gmra.mxu0 %v941
    %v1034 = vpop.f32.mrf.mxu0
    %v1035 = vadd.f32 0.0, %v1034
    %1036 = vmatmul.f32.gmra.mxu0 %v944
    %v1037 = vpop.f32.mrf.mxu0
    %v1038 = vadd.f32 0.0, %v1037
    %1039 = vdwg.mxu0
    %1040 = vmatpush.msra.mxu0 0.0
    %1041 = vmatpush.msra.mxu0 0.0
    %1042 = vmatpush.msra.mxu0 0.0
    %1043 = vmatpush.msra.mxu0 0.0
    %1044 = vmatpush.msra.mxu0 0.0
    %1045 = vmatpush.msra.mxu0 0.0
    %1046 = vmatpush.msra.mxu0 0.0
    %1047 = vmatpush.msra.mxu0 0.0
    %1048 = vmatpush.msra.mxu0 0.0
    %1049 = vmatpush.msra.mxu0 0.0
    %1050 = vmatpush.msra.mxu0 0.0
    %1051 = vmatpush.msra.mxu0 0.0
    %1052 = vmatpush.msra.mxu0 %v849
    %1053 = vmatpush.msra.mxu0 %v833
    %1054 = vmatpush.msra.mxu0 %v817
    %1055 = vmatpush.msra.mxu0 %v801
    %1056 = vmatmul.f32.gmra.mxu0 %v917
    %v1057 = vpop.f32.mrf.mxu0
    %v1058 = vadd.f32 0.0, %v1057
    %1059 = vmatmul.f32.gmra.mxu0 %v920
    %v1060 = vpop.f32.mrf.mxu0
    %v1061 = vadd.f32 0.0, %v1060
    %1062 = vmatmul.f32.gmra.mxu0 %v923
    %v1063 = vpop.f32.mrf.mxu0
    %v1064 = vadd.f32 0.0, %v1063
    %1065 = vmatmul.f32.gmra.mxu0 %v926
    %v1066 = vpop.f32.mrf.mxu0
    %v1067 = vadd.f32 0.0, %v1066
    %1068 = vmatmul.f32.gmra.mxu0 %v929
    %v1069 = vpop.f32.mrf.mxu0
    %v1070 = vadd.f32 0.0, %v1069
    %1071 = vmatmul.f32.gmra.mxu0 %v932
    %v1072 = vpop.f32.mrf.mxu0
    %v1073 = vadd.f32 0.0, %v1072
    %1074 = vmatmul.f32.gmra.mxu0 %v935
    %v1075 = vpop.f32.mrf.mxu0
    %v1076 = vadd.f32 0.0, %v1075
    %1077 = vmatmul.f32.gmra.mxu0 %v938
    %v1078 = vpop.f32.mrf.mxu0
    %v1079 = vadd.f32 0.0, %v1078
    %1080 = vmatmul.f32.gmra.mxu0 %v941
    %v1081 = vpop.f32.mrf.mxu0
    %v1082 = vadd.f32 0.0, %v1081
    %1083 = vmatmul.f32.gmra.mxu0 %v944
    %v1084 = vpop.f32.mrf.mxu0
    %v1085 = vadd.f32 0.0, %v1084
    %1086 = vdwg.mxu0
    %1087 = vmatpush.msra.mxu0 0.0
    %1088 = vmatpush.msra.mxu0 0.0
    %1089 = vmatpush.msra.mxu0 0.0
    %1090 = vmatpush.msra.mxu0 0.0
    %1091 = vmatpush.msra.mxu0 0.0
    %1092 = vmatpush.msra.mxu0 0.0
    %1093 = vmatpush.msra.mxu0 0.0
    %1094 = vmatpush.msra.mxu0 0.0
    %1095 = vmatpush.msra.mxu0 0.0
    %1096 = vmatpush.msra.mxu0 0.0
    %1097 = vmatpush.msra.mxu0 0.0
    %1098 = vmatpush.msra.mxu0 0.0
    %1099 = vmatpush.msra.mxu0 %v850
    %1100 = vmatpush.msra.mxu0 %v834
    %1101 = vmatpush.msra.mxu0 %v818
    %1102 = vmatpush.msra.mxu0 %v802
    %1103 = vmatmul.f32.gmra.mxu0 %v917
    %v1104 = vpop.f32.mrf.mxu0
    %v1105 = vadd.f32 0.0, %v1104
    %1106 = vmatmul.f32.gmra.mxu0 %v920
    %v1107 = vpop.f32.mrf.mxu0
    %v1108 = vadd.f32 0.0, %v1107
    %1109 = vmatmul.f32.gmra.mxu0 %v923
    %v1110 = vpop.f32.mrf.mxu0
    %v1111 = vadd.f32 0.0, %v1110
    %1112 = vmatmul.f32.gmra.mxu0 %v926
    %v1113 = vpop.f32.mrf.mxu0
    %v1114 = vadd.f32 0.0, %v1113
    %1115 = vmatmul.f32.gmra.mxu0 %v929
    %v1116 = vpop.f32.mrf.mxu0
    %v1117 = vadd.f32 0.0, %v1116
    %1118 = vmatmul.f32.gmra.mxu0 %v932
    %v1119 = vpop.f32.mrf.mxu0
    %v1120 = vadd.f32 0.0, %v1119
    %1121 = vmatmul.f32.gmra.mxu0 %v935
    %v1122 = vpop.f32.mrf.mxu0
    %v1123 = vadd.f32 0.0, %v1122
    %1124 = vmatmul.f32.gmra.mxu0 %v938
    %v1125 = vpop.f32.mrf.mxu0
    %v1126 = vadd.f32 0.0, %v1125
    %1127 = vmatmul.f32.gmra.mxu0 %v941
    %v1128 = vpop.f32.mrf.mxu0
    %v1129 = vadd.f32 0.0, %v1128
    %1130 = vmatmul.f32.gmra.mxu0 %v944
    %v1131 = vpop.f32.mrf.mxu0
    %v1132 = vadd.f32 0.0, %v1131
    %1133 = vdwg.mxu0
    %1134 = vmatpush.msra.mxu0 0.0
    %1135 = vmatpush.msra.mxu0 0.0
    %1136 = vmatpush.msra.mxu0 0.0
    %1137 = vmatpush.msra.mxu0 0.0
    %1138 = vmatpush.msra.mxu0 0.0
    %1139 = vmatpush.msra.mxu0 0.0
    %1140 = vmatpush.msra.mxu0 0.0
    %1141 = vmatpush.msra.mxu0 0.0
    %1142 = vmatpush.msra.mxu0 0.0
    %1143 = vmatpush.msra.mxu0 0.0
    %1144 = vmatpush.msra.mxu0 0.0
    %1145 = vmatpush.msra.mxu0 0.0
    %1146 = vmatpush.msra.mxu0 %v851
    %1147 = vmatpush.msra.mxu0 %v835
    %1148 = vmatpush.msra.mxu0 %v819
    %1149 = vmatpush.msra.mxu0 %v803
    %1150 = vmatmul.f32.gmra.mxu0 %v917
    %v1151 = vpop.f32.mrf.mxu0
    %v1152 = vadd.f32 0.0, %v1151
    %1153 = vmatmul.f32.gmra.mxu0 %v920
    %v1154 = vpop.f32.mrf.mxu0
    %v1155 = vadd.f32 0.0, %v1154
    %1156 = vmatmul.f32.gmra.mxu0 %v923
    %v1157 = vpop.f32.mrf.mxu0
    %v1158 = vadd.f32 0.0, %v1157
    %1159 = vmatmul.f32.gmra.mxu0 %v926
    %v1160 = vpop.f32.mrf.mxu0
    %v1161 = vadd.f32 0.0, %v1160
    %1162 = vmatmul.f32.gmra.mxu0 %v929
    %v1163 = vpop.f32.mrf.mxu0
    %v1164 = vadd.f32 0.0, %v1163
    %1165 = vmatmul.f32.gmra.mxu0 %v932
    %v1166 = vpop.f32.mrf.mxu0
    %v1167 = vadd.f32 0.0, %v1166
    %1168 = vmatmul.f32.gmra.mxu0 %v935
    %v1169 = vpop.f32.mrf.mxu0
    %v1170 = vadd.f32 0.0, %v1169
    %1171 = vmatmul.f32.gmra.mxu0 %v938
    %v1172 = vpop.f32.mrf.mxu0
    %v1173 = vadd.f32 0.0, %v1172
    %1174 = vmatmul.f32.gmra.mxu0 %v941
    %v1175 = vpop.f32.mrf.mxu0
    %v1176 = vadd.f32 0.0, %v1175
    %1177 = vmatmul.f32.gmra.mxu0 %v944
    %v1178 = vpop.f32.mrf.mxu0
    %v1179 = vadd.f32 0.0, %v1178
    %1180 = vdwg.mxu0
    %1181 = vmatpush.msra.mxu0 0.0
    %1182 = vmatpush.msra.mxu0 0.0
    %1183 = vmatpush.msra.mxu0 0.0
    %1184 = vmatpush.msra.mxu0 0.0
    %1185 = vmatpush.msra.mxu0 0.0
    %1186 = vmatpush.msra.mxu0 0.0
    %1187 = vmatpush.msra.mxu0 0.0
    %1188 = vmatpush.msra.mxu0 0.0
    %1189 = vmatpush.msra.mxu0 0.0
    %1190 = vmatpush.msra.mxu0 0.0
    %1191 = vmatpush.msra.mxu0 0.0
    %1192 = vmatpush.msra.mxu0 0.0
    %1193 = vmatpush.msra.mxu0 %v852
    %1194 = vmatpush.msra.mxu0 %v836
    %1195 = vmatpush.msra.mxu0 %v820
    %1196 = vmatpush.msra.mxu0 %v804
    %1197 = vmatmul.f32.gmra.mxu0 %v917
    %v1198 = vpop.f32.mrf.mxu0
    %v1199 = vadd.f32 0.0, %v1198
    %1200 = vmatmul.f32.gmra.mxu0 %v920
    %v1201 = vpop.f32.mrf.mxu0
    %v1202 = vadd.f32 0.0, %v1201
    %1203 = vmatmul.f32.gmra.mxu0 %v923
    %v1204 = vpop.f32.mrf.mxu0
    %v1205 = vadd.f32 0.0, %v1204
    %1206 = vmatmul.f32.gmra.mxu0 %v926
    %v1207 = vpop.f32.mrf.mxu0
    %v1208 = vadd.f32 0.0, %v1207
    %1209 = vmatmul.f32.gmra.mxu0 %v929
    %v1210 = vpop.f32.mrf.mxu0
    %v1211 = vadd.f32 0.0, %v1210
    %1212 = vmatmul.f32.gmra.mxu0 %v932
    %v1213 = vpop.f32.mrf.mxu0
    %v1214 = vadd.f32 0.0, %v1213
    %1215 = vmatmul.f32.gmra.mxu0 %v935
    %v1216 = vpop.f32.mrf.mxu0
    %v1217 = vadd.f32 0.0, %v1216
    %1218 = vmatmul.f32.gmra.mxu0 %v938
    %v1219 = vpop.f32.mrf.mxu0
    %v1220 = vadd.f32 0.0, %v1219
    %1221 = vmatmul.f32.gmra.mxu0 %v941
    %v1222 = vpop.f32.mrf.mxu0
    %v1223 = vadd.f32 0.0, %v1222
    %1224 = vmatmul.f32.gmra.mxu0 %v944
    %v1225 = vpop.f32.mrf.mxu0
    %v1226 = vadd.f32 0.0, %v1225
    %1227 = vdwg.mxu0
    %1228 = vmatpush.msra.mxu0 0.0
    %1229 = vmatpush.msra.mxu0 0.0
    %1230 = vmatpush.msra.mxu0 0.0
    %1231 = vmatpush.msra.mxu0 0.0
    %1232 = vmatpush.msra.mxu0 0.0
    %1233 = vmatpush.msra.mxu0 0.0
    %1234 = vmatpush.msra.mxu0 0.0
    %1235 = vmatpush.msra.mxu0 0.0
    %1236 = vmatpush.msra.mxu0 0.0
    %1237 = vmatpush.msra.mxu0 0.0
    %1238 = vmatpush.msra.mxu0 0.0
    %1239 = vmatpush.msra.mxu0 0.0
    %1240 = vmatpush.msra.mxu0 %v853
    %1241 = vmatpush.msra.mxu0 %v837
    %1242 = vmatpush.msra.mxu0 %v821
    %1243 = vmatpush.msra.mxu0 %v805
    %1244 = vmatmul.f32.gmra.mxu0 %v917
    %v1245 = vpop.f32.mrf.mxu0
    %v1246 = vadd.f32 0.0, %v1245
    %1247 = vmatmul.f32.gmra.mxu0 %v920
    %v1248 = vpop.f32.mrf.mxu0
    %v1249 = vadd.f32 0.0, %v1248
    %1250 = vmatmul.f32.gmra.mxu0 %v923
    %v1251 = vpop.f32.mrf.mxu0
    %v1252 = vadd.f32 0.0, %v1251
    %1253 = vmatmul.f32.gmra.mxu0 %v926
    %v1254 = vpop.f32.mrf.mxu0
    %v1255 = vadd.f32 0.0, %v1254
    %1256 = vmatmul.f32.gmra.mxu0 %v929
    %v1257 = vpop.f32.mrf.mxu0
    %v1258 = vadd.f32 0.0, %v1257
    %1259 = vmatmul.f32.gmra.mxu0 %v932
    %v1260 = vpop.f32.mrf.mxu0
    %v1261 = vadd.f32 0.0, %v1260
    %1262 = vmatmul.f32.gmra.mxu0 %v935
    %v1263 = vpop.f32.mrf.mxu0
    %v1264 = vadd.f32 0.0, %v1263
    %1265 = vmatmul.f32.gmra.mxu0 %v938
    %v1266 = vpop.f32.mrf.mxu0
    %v1267 = vadd.f32 0.0, %v1266
    %1268 = vmatmul.f32.gmra.mxu0 %v941
    %v1269 = vpop.f32.mrf.mxu0
    %v1270 = vadd.f32 0.0, %v1269
    %1271 = vmatmul.f32.gmra.mxu0 %v944
    %v1272 = vpop.f32.mrf.mxu0
    %v1273 = vadd.f32 0.0, %v1272
    %1274 = vdwg.mxu0
    %1275 = vmatpush.msra.mxu0 0.0
    %1276 = vmatpush.msra.mxu0 0.0
    %1277 = vmatpush.msra.mxu0 0.0
    %1278 = vmatpush.msra.mxu0 0.0
    %1279 = vmatpush.msra.mxu0 0.0
    %1280 = vmatpush.msra.mxu0 0.0
    %1281 = vmatpush.msra.mxu0 0.0
    %1282 = vmatpush.msra.mxu0 0.0
    %1283 = vmatpush.msra.mxu0 0.0
    %1284 = vmatpush.msra.mxu0 0.0
    %1285 = vmatpush.msra.mxu0 0.0
    %1286 = vmatpush.msra.mxu0 0.0
    %1287 = vmatpush.msra.mxu0 %v854
    %1288 = vmatpush.msra.mxu0 %v838
    %1289 = vmatpush.msra.mxu0 %v822
    %1290 = vmatpush.msra.mxu0 %v806
    %1291 = vmatmul.f32.gmra.mxu0 %v917
    %v1292 = vpop.f32.mrf.mxu0
    %v1293 = vadd.f32 0.0, %v1292
    %1294 = vmatmul.f32.gmra.mxu0 %v920
    %v1295 = vpop.f32.mrf.mxu0
    %v1296 = vadd.f32 0.0, %v1295
    %1297 = vmatmul.f32.gmra.mxu0 %v923
    %v1298 = vpop.f32.mrf.mxu0
    %v1299 = vadd.f32 0.0, %v1298
    %1300 = vmatmul.f32.gmra.mxu0 %v926
    %v1301 = vpop.f32.mrf.mxu0
    %v1302 = vadd.f32 0.0, %v1301
    %1303 = vmatmul.f32.gmra.mxu0 %v929
    %v1304 = vpop.f32.mrf.mxu0
    %v1305 = vadd.f32 0.0, %v1304
    %1306 = vmatmul.f32.gmra.mxu0 %v932
    %v1307 = vpop.f32.mrf.mxu0
    %v1308 = vadd.f32 0.0, %v1307
    %1309 = vmatmul.f32.gmra.mxu0 %v935
    %v1310 = vpop.f32.mrf.mxu0
    %v1311 = vadd.f32 0.0, %v1310
    %1312 = vmatmul.f32.gmra.mxu0 %v938
    %v1313 = vpop.f32.mrf.mxu0
    %v1314 = vadd.f32 0.0, %v1313
    %1315 = vmatmul.f32.gmra.mxu0 %v941
    %v1316 = vpop.f32.mrf.mxu0
    %v1317 = vadd.f32 0.0, %v1316
    %1318 = vmatmul.f32.gmra.mxu0 %v944
    %v1319 = vpop.f32.mrf.mxu0
    %v1320 = vadd.f32 0.0, %v1319
    %1321 = vdwg.mxu0
    %1322 = vmatpush.msra.mxu0 0.0
    %1323 = vmatpush.msra.mxu0 0.0
    %1324 = vmatpush.msra.mxu0 0.0
    %1325 = vmatpush.msra.mxu0 0.0
    %1326 = vmatpush.msra.mxu0 0.0
    %1327 = vmatpush.msra.mxu0 0.0
    %1328 = vmatpush.msra.mxu0 0.0
    %1329 = vmatpush.msra.mxu0 0.0
    %1330 = vmatpush.msra.mxu0 0.0
    %1331 = vmatpush.msra.mxu0 0.0
    %1332 = vmatpush.msra.mxu0 0.0
    %1333 = vmatpush.msra.mxu0 0.0
    %1334 = vmatpush.msra.mxu0 %v855
    %1335 = vmatpush.msra.mxu0 %v839
    %1336 = vmatpush.msra.mxu0 %v823
    %1337 = vmatpush.msra.mxu0 %v807
    %1338 = vmatmul.f32.gmra.mxu0 %v917
    %v1339 = vpop.f32.mrf.mxu0
    %v1340 = vadd.f32 0.0, %v1339
    %1341 = vmatmul.f32.gmra.mxu0 %v920
    %v1342 = vpop.f32.mrf.mxu0
    %v1343 = vadd.f32 0.0, %v1342
    %1344 = vmatmul.f32.gmra.mxu0 %v923
    %v1345 = vpop.f32.mrf.mxu0
    %v1346 = vadd.f32 0.0, %v1345
    %1347 = vmatmul.f32.gmra.mxu0 %v926
    %v1348 = vpop.f32.mrf.mxu0
    %v1349 = vadd.f32 0.0, %v1348
    %1350 = vmatmul.f32.gmra.mxu0 %v929
    %v1351 = vpop.f32.mrf.mxu0
    %v1352 = vadd.f32 0.0, %v1351
    %1353 = vmatmul.f32.gmra.mxu0 %v932
    %v1354 = vpop.f32.mrf.mxu0
    %v1355 = vadd.f32 0.0, %v1354
    %1356 = vmatmul.f32.gmra.mxu0 %v935
    %v1357 = vpop.f32.mrf.mxu0
    %v1358 = vadd.f32 0.0, %v1357
    %1359 = vmatmul.f32.gmra.mxu0 %v938
    %v1360 = vpop.f32.mrf.mxu0
    %v1361 = vadd.f32 0.0, %v1360
    %1362 = vmatmul.f32.gmra.mxu0 %v941
    %v1363 = vpop.f32.mrf.mxu0
    %v1364 = vadd.f32 0.0, %v1363
    %1365 = vmatmul.f32.gmra.mxu0 %v944
    %v1366 = vpop.f32.mrf.mxu0
    %v1367 = vadd.f32 0.0, %v1366
    %1368 = vdwg.mxu0
    %1369 = vmatpush.msra.mxu0 0.0
    %1370 = vmatpush.msra.mxu0 0.0
    %1371 = vmatpush.msra.mxu0 0.0
    %1372 = vmatpush.msra.mxu0 0.0
    %1373 = vmatpush.msra.mxu0 0.0
    %1374 = vmatpush.msra.mxu0 0.0
    %1375 = vmatpush.msra.mxu0 0.0
    %1376 = vmatpush.msra.mxu0 0.0
    %1377 = vmatpush.msra.mxu0 0.0
    %1378 = vmatpush.msra.mxu0 0.0
    %1379 = vmatpush.msra.mxu0 0.0
    %1380 = vmatpush.msra.mxu0 0.0
    %1381 = vmatpush.msra.mxu0 %v856
    %1382 = vmatpush.msra.mxu0 %v840
    %1383 = vmatpush.msra.mxu0 %v824
    %1384 = vmatpush.msra.mxu0 %v808
    %1385 = vmatmul.f32.gmra.mxu0 %v917
    %v1386 = vpop.f32.mrf.mxu0
    %v1387 = vadd.f32 0.0, %v1386
    %1388 = vmatmul.f32.gmra.mxu0 %v920
    %v1389 = vpop.f32.mrf.mxu0
    %v1390 = vadd.f32 0.0, %v1389
    %1391 = vmatmul.f32.gmra.mxu0 %v923
    %v1392 = vpop.f32.mrf.mxu0
    %v1393 = vadd.f32 0.0, %v1392
    %1394 = vmatmul.f32.gmra.mxu0 %v926
    %v1395 = vpop.f32.mrf.mxu0
    %v1396 = vadd.f32 0.0, %v1395
    %1397 = vmatmul.f32.gmra.mxu0 %v929
    %v1398 = vpop.f32.mrf.mxu0
    %v1399 = vadd.f32 0.0, %v1398
    %1400 = vmatmul.f32.gmra.mxu0 %v932
    %v1401 = vpop.f32.mrf.mxu0
    %v1402 = vadd.f32 0.0, %v1401
    %1403 = vmatmul.f32.gmra.mxu0 %v935
    %v1404 = vpop.f32.mrf.mxu0
    %v1405 = vadd.f32 0.0, %v1404
    %1406 = vmatmul.f32.gmra.mxu0 %v938
    %v1407 = vpop.f32.mrf.mxu0
    %v1408 = vadd.f32 0.0, %v1407
    %1409 = vmatmul.f32.gmra.mxu0 %v941
    %v1410 = vpop.f32.mrf.mxu0
    %v1411 = vadd.f32 0.0, %v1410
    %1412 = vmatmul.f32.gmra.mxu0 %v944
    %v1413 = vpop.f32.mrf.mxu0
    %v1414 = vadd.f32 0.0, %v1413
    %1415 = vdwg.mxu0
    %1416 = vmatpush.msra.mxu0 0.0
    %1417 = vmatpush.msra.mxu0 0.0
    %1418 = vmatpush.msra.mxu0 0.0
    %1419 = vmatpush.msra.mxu0 0.0
    %1420 = vmatpush.msra.mxu0 0.0
    %1421 = vmatpush.msra.mxu0 0.0
    %1422 = vmatpush.msra.mxu0 0.0
    %1423 = vmatpush.msra.mxu0 0.0
    %1424 = vmatpush.msra.mxu0 0.0
    %1425 = vmatpush.msra.mxu0 0.0
    %1426 = vmatpush.msra.mxu0 0.0
    %1427 = vmatpush.msra.mxu0 0.0
    %1428 = vmatpush.msra.mxu0 %v857
    %1429 = vmatpush.msra.mxu0 %v841
    %1430 = vmatpush.msra.mxu0 %v825
    %1431 = vmatpush.msra.mxu0 %v809
    %1432 = vmatmul.f32.gmra.mxu0 %v917
    %v1433 = vpop.f32.mrf.mxu0
    %v1434 = vadd.f32 0.0, %v1433
    %1435 = vmatmul.f32.gmra.mxu0 %v920
    %v1436 = vpop.f32.mrf.mxu0
    %v1437 = vadd.f32 0.0, %v1436
    %1438 = vmatmul.f32.gmra.mxu0 %v923
    %v1439 = vpop.f32.mrf.mxu0
    %v1440 = vadd.f32 0.0, %v1439
    %1441 = vmatmul.f32.gmra.mxu0 %v926
    %v1442 = vpop.f32.mrf.mxu0
    %v1443 = vadd.f32 0.0, %v1442
    %1444 = vmatmul.f32.gmra.mxu0 %v929
    %v1445 = vpop.f32.mrf.mxu0
    %v1446 = vadd.f32 0.0, %v1445
    %1447 = vmatmul.f32.gmra.mxu0 %v932
    %v1448 = vpop.f32.mrf.mxu0
    %v1449 = vadd.f32 0.0, %v1448
    %1450 = vmatmul.f32.gmra.mxu0 %v935
    %v1451 = vpop.f32.mrf.mxu0
    %v1452 = vadd.f32 0.0, %v1451
    %1453 = vmatmul.f32.gmra.mxu0 %v938
    %v1454 = vpop.f32.mrf.mxu0
    %v1455 = vadd.f32 0.0, %v1454
    %1456 = vmatmul.f32.gmra.mxu0 %v941
    %v1457 = vpop.f32.mrf.mxu0
    %v1458 = vadd.f32 0.0, %v1457
    %1459 = vmatmul.f32.gmra.mxu0 %v944
    %v1460 = vpop.f32.mrf.mxu0
    %v1461 = vadd.f32 0.0, %v1460
    %1462 = vdwg.mxu0
    %1463 = vmatpush.msra.mxu0 0.0
    %1464 = vmatpush.msra.mxu0 0.0
    %1465 = vmatpush.msra.mxu0 0.0
    %1466 = vmatpush.msra.mxu0 0.0
    %1467 = vmatpush.msra.mxu0 0.0
    %1468 = vmatpush.msra.mxu0 0.0
    %1469 = vmatpush.msra.mxu0 0.0
    %1470 = vmatpush.msra.mxu0 0.0
    %1471 = vmatpush.msra.mxu0 0.0
    %1472 = vmatpush.msra.mxu0 0.0
    %1473 = vmatpush.msra.mxu0 0.0
    %1474 = vmatpush.msra.mxu0 0.0
    %1475 = vmatpush.msra.mxu0 %v858
    %1476 = vmatpush.msra.mxu0 %v842
    %1477 = vmatpush.msra.mxu0 %v826
    %1478 = vmatpush.msra.mxu0 %v810
    %1479 = vmatmul.f32.gmra.mxu0 %v917
    %v1480 = vpop.f32.mrf.mxu0
    %v1481 = vadd.f32 0.0, %v1480
    %1482 = vmatmul.f32.gmra.mxu0 %v920
    %v1483 = vpop.f32.mrf.mxu0
    %v1484 = vadd.f32 0.0, %v1483
    %1485 = vmatmul.f32.gmra.mxu0 %v923
    %v1486 = vpop.f32.mrf.mxu0
    %v1487 = vadd.f32 0.0, %v1486
    %1488 = vmatmul.f32.gmra.mxu0 %v926
    %v1489 = vpop.f32.mrf.mxu0
    %v1490 = vadd.f32 0.0, %v1489
    %1491 = vmatmul.f32.gmra.mxu0 %v929
    %v1492 = vpop.f32.mrf.mxu0
    %v1493 = vadd.f32 0.0, %v1492
    %1494 = vmatmul.f32.gmra.mxu0 %v932
    %v1495 = vpop.f32.mrf.mxu0
    %v1496 = vadd.f32 0.0, %v1495
    %1497 = vmatmul.f32.gmra.mxu0 %v935
    %v1498 = vpop.f32.mrf.mxu0
    %v1499 = vadd.f32 0.0, %v1498
    %1500 = vmatmul.f32.gmra.mxu0 %v938
    %v1501 = vpop.f32.mrf.mxu0
    %v1502 = vadd.f32 0.0, %v1501
    %1503 = vmatmul.f32.gmra.mxu0 %v941
    %v1504 = vpop.f32.mrf.mxu0
    %v1505 = vadd.f32 0.0, %v1504
    %1506 = vmatmul.f32.gmra.mxu0 %v944
    %v1507 = vpop.f32.mrf.mxu0
    %v1508 = vadd.f32 0.0, %v1507
    %1509 = vdwg.mxu0
    %1510 = vmatpush.msra.mxu0 0.0
    %1511 = vmatpush.msra.mxu0 0.0
    %1512 = vmatpush.msra.mxu0 0.0
    %1513 = vmatpush.msra.mxu0 0.0
    %1514 = vmatpush.msra.mxu0 0.0
    %1515 = vmatpush.msra.mxu0 0.0
    %1516 = vmatpush.msra.mxu0 0.0
    %1517 = vmatpush.msra.mxu0 0.0
    %1518 = vmatpush.msra.mxu0 0.0
    %1519 = vmatpush.msra.mxu0 0.0
    %1520 = vmatpush.msra.mxu0 0.0
    %1521 = vmatpush.msra.mxu0 0.0
    %1522 = vmatpush.msra.mxu0 %v859
    %1523 = vmatpush.msra.mxu0 %v843
    %1524 = vmatpush.msra.mxu0 %v827
    %1525 = vmatpush.msra.mxu0 %v811
    %1526 = vmatmul.f32.gmra.mxu0 %v917
    %v1527 = vpop.f32.mrf.mxu0
    %v1528 = vadd.f32 0.0, %v1527
    %1529 = vmatmul.f32.gmra.mxu0 %v920
    %v1530 = vpop.f32.mrf.mxu0
    %v1531 = vadd.f32 0.0, %v1530
    %1532 = vmatmul.f32.gmra.mxu0 %v923
    %v1533 = vpop.f32.mrf.mxu0
    %v1534 = vadd.f32 0.0, %v1533
    %1535 = vmatmul.f32.gmra.mxu0 %v926
    %v1536 = vpop.f32.mrf.mxu0
    %v1537 = vadd.f32 0.0, %v1536
    %1538 = vmatmul.f32.gmra.mxu0 %v929
    %v1539 = vpop.f32.mrf.mxu0
    %v1540 = vadd.f32 0.0, %v1539
    %1541 = vmatmul.f32.gmra.mxu0 %v932
    %v1542 = vpop.f32.mrf.mxu0
    %v1543 = vadd.f32 0.0, %v1542
    %1544 = vmatmul.f32.gmra.mxu0 %v935
    %v1545 = vpop.f32.mrf.mxu0
    %v1546 = vadd.f32 0.0, %v1545
    %1547 = vmatmul.f32.gmra.mxu0 %v938
    %v1548 = vpop.f32.mrf.mxu0
    %v1549 = vadd.f32 0.0, %v1548
    %1550 = vmatmul.f32.gmra.mxu0 %v941
    %v1551 = vpop.f32.mrf.mxu0
    %v1552 = vadd.f32 0.0, %v1551
    %1553 = vmatmul.f32.gmra.mxu0 %v944
    %v1554 = vpop.f32.mrf.mxu0
    %v1555 = vadd.f32 0.0, %v1554
    %1556 = vdwg.mxu0
    %1557 = vmatpush.msra.mxu0 0.0
    %1558 = vmatpush.msra.mxu0 0.0
    %1559 = vmatpush.msra.mxu0 0.0
    %1560 = vmatpush.msra.mxu0 0.0
    %1561 = vmatpush.msra.mxu0 0.0
    %1562 = vmatpush.msra.mxu0 0.0
    %1563 = vmatpush.msra.mxu0 0.0
    %1564 = vmatpush.msra.mxu0 0.0
    %1565 = vmatpush.msra.mxu0 0.0
    %1566 = vmatpush.msra.mxu0 0.0
    %1567 = vmatpush.msra.mxu0 0.0
    %1568 = vmatpush.msra.mxu0 0.0
    %1569 = vmatpush.msra.mxu0 %v860
    %1570 = vmatpush.msra.mxu0 %v844
    %1571 = vmatpush.msra.mxu0 %v828
    %1572 = vmatpush.msra.mxu0 %v812
    %1573 = vmatmul.f32.gmra.mxu0 %v917
    %v1574 = vpop.f32.mrf.mxu0
    %v1575 = vadd.f32 0.0, %v1574
    %1576 = vmatmul.f32.gmra.mxu0 %v920
    %v1577 = vpop.f32.mrf.mxu0
    %v1578 = vadd.f32 0.0, %v1577
    %1579 = vmatmul.f32.gmra.mxu0 %v923
    %v1580 = vpop.f32.mrf.mxu0
    %v1581 = vadd.f32 0.0, %v1580
    %1582 = vmatmul.f32.gmra.mxu0 %v926
    %v1583 = vpop.f32.mrf.mxu0
    %v1584 = vadd.f32 0.0, %v1583
    %1585 = vmatmul.f32.gmra.mxu0 %v929
    %v1586 = vpop.f32.mrf.mxu0
    %v1587 = vadd.f32 0.0, %v1586
    %1588 = vmatmul.f32.gmra.mxu0 %v932
    %v1589 = vpop.f32.mrf.mxu0
    %v1590 = vadd.f32 0.0, %v1589
    %1591 = vmatmul.f32.gmra.mxu0 %v935
    %v1592 = vpop.f32.mrf.mxu0
    %v1593 = vadd.f32 0.0, %v1592
    %1594 = vmatmul.f32.gmra.mxu0 %v938
    %v1595 = vpop.f32.mrf.mxu0
    %v1596 = vadd.f32 0.0, %v1595
    %1597 = vmatmul.f32.gmra.mxu0 %v941
    %v1598 = vpop.f32.mrf.mxu0
    %v1599 = vadd.f32 0.0, %v1598
    %1600 = vmatmul.f32.gmra.mxu0 %v944
    %v1601 = vpop.f32.mrf.mxu0
    %v1602 = vadd.f32 0.0, %v1601
    %1603 = vdwg.mxu0
    %1604 = vmatpush.msra.mxu0 0.0
    %1605 = vmatpush.msra.mxu0 0.0
    %1606 = vmatpush.msra.mxu0 0.0
    %1607 = vmatpush.msra.mxu0 0.0
    %1608 = vmatpush.msra.mxu0 0.0
    %1609 = vmatpush.msra.mxu0 0.0
    %1610 = vmatpush.msra.mxu0 0.0
    %1611 = vmatpush.msra.mxu0 0.0
    %1612 = vmatpush.msra.mxu0 0.0
    %1613 = vmatpush.msra.mxu0 0.0
    %1614 = vmatpush.msra.mxu0 0.0
    %1615 = vmatpush.msra.mxu0 0.0
    %1616 = vmatpush.msra.mxu0 %v861
    %1617 = vmatpush.msra.mxu0 %v845
    %1618 = vmatpush.msra.mxu0 %v829
    %1619 = vmatpush.msra.mxu0 %v813
    %1620 = vmatmul.f32.gmra.mxu0 %v917
    %v1621 = vpop.f32.mrf.mxu0
    %v1622 = vadd.f32 0.0, %v1621
    %1623 = vmatmul.f32.gmra.mxu0 %v920
    %v1624 = vpop.f32.mrf.mxu0
    %v1625 = vadd.f32 0.0, %v1624
    %1626 = vmatmul.f32.gmra.mxu0 %v923
    %v1627 = vpop.f32.mrf.mxu0
    %v1628 = vadd.f32 0.0, %v1627
    %1629 = vmatmul.f32.gmra.mxu0 %v926
    %v1630 = vpop.f32.mrf.mxu0
    %v1631 = vadd.f32 0.0, %v1630
    %1632 = vmatmul.f32.gmra.mxu0 %v929
    %v1633 = vpop.f32.mrf.mxu0
    %v1634 = vadd.f32 0.0, %v1633
    %1635 = vmatmul.f32.gmra.mxu0 %v932
    %v1636 = vpop.f32.mrf.mxu0
    %v1637 = vadd.f32 0.0, %v1636
    %1638 = vmatmul.f32.gmra.mxu0 %v935
    %v1639 = vpop.f32.mrf.mxu0
    %v1640 = vadd.f32 0.0, %v1639
    %1641 = vmatmul.f32.gmra.mxu0 %v938
    %v1642 = vpop.f32.mrf.mxu0
    %v1643 = vadd.f32 0.0, %v1642
    %1644 = vmatmul.f32.gmra.mxu0 %v941
    %v1645 = vpop.f32.mrf.mxu0
    %v1646 = vadd.f32 0.0, %v1645
    %1647 = vmatmul.f32.gmra.mxu0 %v944
    %v1648 = vpop.f32.mrf.mxu0
    %v1649 = vadd.f32 0.0, %v1648
    %1650 = vdwg.mxu0
    %1651 = vmatpush.msra.mxu0 0.0
    %1652 = vmatpush.msra.mxu0 0.0
    %1653 = vmatpush.msra.mxu0 0.0
    %1654 = vmatpush.msra.mxu0 0.0
    %1655 = vmatpush.msra.mxu0 0.0
    %1656 = vmatpush.msra.mxu0 0.0
    %1657 = vmatpush.msra.mxu0 0.0
    %1658 = vmatpush.msra.mxu0 0.0
    %1659 = vmatpush.msra.mxu0 0.0
    %1660 = vmatpush.msra.mxu0 0.0
    %1661 = vmatpush.msra.mxu0 0.0
    %1662 = vmatpush.msra.mxu0 0.0
    %1663 = vmatpush.msra.mxu0 %v862
    %1664 = vmatpush.msra.mxu0 %v846
    %1665 = vmatpush.msra.mxu0 %v830
    %1666 = vmatpush.msra.mxu0 %v814
    %1667 = vmatmul.f32.gmra.mxu0 %v917
    %v1668 = vpop.f32.mrf.mxu0
    %v1669 = vadd.f32 0.0, %v1668
    %1670 = vmatmul.f32.gmra.mxu0 %v920
    %v1671 = vpop.f32.mrf.mxu0
    %v1672 = vadd.f32 0.0, %v1671
    %1673 = vmatmul.f32.gmra.mxu0 %v923
    %v1674 = vpop.f32.mrf.mxu0
    %v1675 = vadd.f32 0.0, %v1674
    %1676 = vmatmul.f32.gmra.mxu0 %v926
    %v1677 = vpop.f32.mrf.mxu0
    %v1678 = vadd.f32 0.0, %v1677
    %1679 = vmatmul.f32.gmra.mxu0 %v929
    %v1680 = vpop.f32.mrf.mxu0
    %v1681 = vadd.f32 0.0, %v1680
    %1682 = vmatmul.f32.gmra.mxu0 %v932
    %v1683 = vpop.f32.mrf.mxu0
    %v1684 = vadd.f32 0.0, %v1683
    %1685 = vmatmul.f32.gmra.mxu0 %v935
    %v1686 = vpop.f32.mrf.mxu0
    %v1687 = vadd.f32 0.0, %v1686
    %1688 = vmatmul.f32.gmra.mxu0 %v938
    %v1689 = vpop.f32.mrf.mxu0
    %v1690 = vadd.f32 0.0, %v1689
    %1691 = vmatmul.f32.gmra.mxu0 %v941
    %v1692 = vpop.f32.mrf.mxu0
    %v1693 = vadd.f32 0.0, %v1692
    %1694 = vmatmul.f32.gmra.mxu0 %v944
    %v1695 = vpop.f32.mrf.mxu0
    %v1696 = vadd.f32 0.0, %v1695
    %1697 = vdwg.mxu0
    %v1698 = vmul.u32 %v527, 2
    %v1699 = vmul.u32 %v528, 2
    %vm1700 = vcmp.eq.s32.totalorder %v510, %v1698
    %vm1701 = vcmp.eq.s32.totalorder %v510, %v1699
    %v1702 = vsel %vm1700, 1, 0
    %v1703 = vsel %vm1701, 1, 0
    %v1704 = vcvt.s32.f32 %v1702
    %v1705 = vcvt.s32.f32 %v1703
    %v1706 = vadd.s32 %v1698, 1
    %v1707 = vadd.s32 %v1699, 1
    %vm1708 = vcmp.eq.s32.totalorder %v510, %v1706
    %vm1709 = vcmp.eq.s32.totalorder %v510, %v1707
    %v1710 = vsel %vm1708, 1, 0
    %v1711 = vsel %vm1709, 1, 0
    %v1712 = vcvt.s32.f32 %v1710
    %v1713 = vcvt.s32.f32 %v1711
    %v1715 = vsel %vm915, %v1704, 0
    %v1718 = vsel %vm915, %v1705, 0
    %v1721 = vsel %vm915, %v1712, 0
    %v1724 = vsel %vm915, %v1713, 0
    %1726 = vmatpush.msra.mxu0 0.0
    %1727 = vmatpush.msra.mxu0 0.0
    %1728 = vmatpush.msra.mxu0 0.0
    %1729 = vmatpush.msra.mxu0 0.0
    %1730 = vmatpush.msra.mxu0 0.0
    %1731 = vmatpush.msra.mxu0 0.0
    %1732 = vmatpush.msra.mxu0 0.0
    %1733 = vmatpush.msra.mxu0 0.0
    %1734 = vmatpush.msra.mxu0 0.0
    %1735 = vmatpush.msra.mxu0 0.0
    %1736 = vmatpush.msra.mxu0 0.0
    %1737 = vmatpush.msra.mxu0 0.0
    %1738 = vmatpush.msra.mxu0 %v437
    %1739 = vmatpush.msra.mxu0 %v434
    %1740 = vmatpush.msra.mxu0 %v431
    %1741 = vmatpush.msra.mxu0 %v428
    %1742 = vmatmul.f32.gmra.mxu0 %v1715
    %v1743 = vpop.f32.mrf.mxu0
    %v1744 = vadd.f32 0.0, %v1743
    %1745 = vmatmul.f32.gmra.mxu0 %v1718
    %v1746 = vpop.f32.mrf.mxu0
    %v1747 = vadd.f32 0.0, %v1746
    %1748 = vmatmul.f32.gmra.mxu0 %v1721
    %v1749 = vpop.f32.mrf.mxu0
    %v1750 = vadd.f32 0.0, %v1749
    %1751 = vmatmul.f32.gmra.mxu0 %v1724
    %v1752 = vpop.f32.mrf.mxu0
    %v1753 = vadd.f32 0.0, %v1752
    %1754 = vdwg.mxu0
    %1757 = vrot.lane.b32.xlu0 %v1750, 64
    %v1758 = vpop.permute.xlu0 %1757
    %1759 = vrot.lane.b32.xlu0 %v1753, 64
    %v1760 = vpop.permute.xlu0 %1759
    %vm1763 = vcmask 523264
    %v1764 = vsel %vm1763, %v1744, %v1758
    %v1765 = vsel %vm1763, %v1747, %v1760
    %v1766 = vld [vmem:[#allocation7] sm:$0xff]
    %v1767 = vld [vmem:[#allocation7 + $0x8] sm:$0xff]
    %v1768 = vld [vmem:[#allocation7 + $0x10] sm:$0xff]
    %v1769 = vld [vmem:[#allocation7 + $0x18] sm:$0xff]
    %v1770 = vld [vmem:[#allocation7 + $0x20] sm:$0xff]
    %v1771 = vmul.f32 %v964, %v1766
    %v1772 = vmul.f32 %v967, %v1767
    %v1773 = vmul.f32 %v970, %v1768
    %v1774 = vmul.f32 %v973, %v1769
    %v1775 = vmul.f32 %v976, %v1770
    %v1776 = vmul.f32 %v1771, 1.442695
    %v1777 = vpow.pop %v1776
    %v1778 = vmul.f32 %v1772, 1.442695
    %v1779 = vpow.pop %v1778
    %v1780 = vmul.f32 %v1773, 1.442695
    %v1781 = vpow.pop %v1780
    %v1782 = vmul.f32 %v1774, 1.442695
    %v1783 = vpow.pop %v1782
    %v1784 = vmul.f32 %v1775, 1.442695
    %v1785 = vpow.pop %v1784
    %v1786 = vperm.slane %v1764, 0
    %v1787 = vmul.f32 %v979, %v1786
    %v1788 = vmul.f32 %v982, %v1786
    %v1789 = vmul.f32 %v985, %v1786
    %v1790 = vmul.f32 %v988, %v1786
    %v1791 = vmul.f32 %v991, %v1786
    %v1792 = vmul.f32 %v1777, 0.0
    %v1793 = vmul.f32 %v1779, 0.0
    %v1794 = vmul.f32 %v1781, 0.0
    %v1795 = vmul.f32 %v1783, 0.0
    %v1796 = vmul.f32 %v1785, 0.0
    %v1797 = vadd.f32 %v1792, %v1787
    %v1798 = vadd.f32 %v1793, %v1788
    %v1799 = vadd.f32 %v1794, %v1789
    %v1800 = vadd.f32 %v1795, %v1790
    %v1801 = vadd.f32 %v1796, %v1791
    %v1802 = vmul.f32 %v1011, %v1766
    %v1803 = vmul.f32 %v1014, %v1767
    %v1804 = vmul.f32 %v1017, %v1768
    %v1805 = vmul.f32 %v1020, %v1769
    %v1806 = vmul.f32 %v1023, %v1770
    %v1807 = vmul.f32 %v1802, 1.442695
    %v1808 = vpow.pop %v1807
    %v1809 = vmul.f32 %v1803, 1.442695
    %v1810 = vpow.pop %v1809
    %v1811 = vmul.f32 %v1804, 1.442695
    %v1812 = vpow.pop %v1811
    %v1813 = vmul.f32 %v1805, 1.442695
    %v1814 = vpow.pop %v1813
    %v1815 = vmul.f32 %v1806, 1.442695
    %v1816 = vpow.pop %v1815
    %v1817 = vperm.slane %v1764, 1
    %v1818 = vmul.f32 %v1026, %v1817
    %v1819 = vmul.f32 %v1029, %v1817
    %v1820 = vmul.f32 %v1032, %v1817
    %v1821 = vmul.f32 %v1035, %v1817
    %v1822 = vmul.f32 %v1038, %v1817
    %v1823 = vmul.f32 %v1808, %v1797
    %v1824 = vmul.f32 %v1810, %v1798
    %v1825 = vmul.f32 %v1812, %v1799
    %v1826 = vmul.f32 %v1814, %v1800
    %v1827 = vmul.f32 %v1816, %v1801
    %v1828 = vadd.f32 %v1823, %v1818
    %v1829 = vadd.f32 %v1824, %v1819
    %v1830 = vadd.f32 %v1825, %v1820
    %v1831 = vadd.f32 %v1826, %v1821
    %v1832 = vadd.f32 %v1827, %v1822
    %v1833 = vmul.f32 %v1058, %v1766
    %v1834 = vmul.f32 %v1061, %v1767
    %v1835 = vmul.f32 %v1064, %v1768
    %v1836 = vmul.f32 %v1067, %v1769
    %v1837 = vmul.f32 %v1070, %v1770
    %v1838 = vmul.f32 %v1833, 1.442695
    %v1839 = vpow.pop %v1838
    %v1840 = vmul.f32 %v1834, 1.442695
    %v1841 = vpow.pop %v1840
    %v1842 = vmul.f32 %v1835, 1.442695
    %v1843 = vpow.pop %v1842
    %v1844 = vmul.f32 %v1836, 1.442695
    %v1845 = vpow.pop %v1844
    %v1846 = vmul.f32 %v1837, 1.442695
    %v1847 = vpow.pop %v1846
    %v1848 = vperm.slane %v1764, 2
    %v1849 = vmul.f32 %v1073, %v1848
    %v1850 = vmul.f32 %v1076, %v1848
    %v1851 = vmul.f32 %v1079, %v1848
    %v1852 = vmul.f32 %v1082, %v1848
    %v1853 = vmul.f32 %v1085, %v1848
    %v1854 = vmul.f32 %v1839, %v1828
    %v1855 = vmul.f32 %v1841, %v1829
    %v1856 = vmul.f32 %v1843, %v1830
    %v1857 = vmul.f32 %v1845, %v1831
    %v1858 = vmul.f32 %v1847, %v1832
    %v1859 = vadd.f32 %v1854, %v1849
    %v1860 = vadd.f32 %v1855, %v1850
    %v1861 = vadd.f32 %v1856, %v1851
    %v1862 = vadd.f32 %v1857, %v1852
    %v1863 = vadd.f32 %v1858, %v1853
    %v1864 = vmul.f32 %v1105, %v1766
    %v1865 = vmul.f32 %v1108, %v1767
    %v1866 = vmul.f32 %v1111, %v1768
    %v1867 = vmul.f32 %v1114, %v1769
    %v1868 = vmul.f32 %v1117, %v1770
    %v1869 = vmul.f32 %v1864, 1.442695
    %v1870 = vpow.pop %v1869
    %v1871 = vmul.f32 %v1865, 1.442695
    %v1872 = vpow.pop %v1871
    %v1873 = vmul.f32 %v1866, 1.442695
    %v1874 = vpow.pop %v1873
    %v1875 = vmul.f32 %v1867, 1.442695
    %v1876 = vpow.pop %v1875
    %v1877 = vmul.f32 %v1868, 1.442695
    %v1878 = vpow.pop %v1877
    %v1879 = vperm.slane %v1764, 3
    %v1880 = vmul.f32 %v1120, %v1879
    %v1881 = vmul.f32 %v1123, %v1879
    %v1882 = vmul.f32 %v1126, %v1879
    %v1883 = vmul.f32 %v1129, %v1879
    %v1884 = vmul.f32 %v1132, %v1879
    %v1885 = vmul.f32 %v1870, %v1859
    %v1886 = vmul.f32 %v1872, %v1860
    %v1887 = vmul.f32 %v1874, %v1861
    %v1888 = vmul.f32 %v1876, %v1862
    %v1889 = vmul.f32 %v1878, %v1863
    %v1890 = vadd.f32 %v1885, %v1880
    %v1891 = vadd.f32 %v1886, %v1881
    %v1892 = vadd.f32 %v1887, %v1882
    %v1893 = vadd.f32 %v1888, %v1883
    %v1894 = vadd.f32 %v1889, %v1884
    %v1895 = vmul.f32 %v1152, %v1766
    %v1896 = vmul.f32 %v1155, %v1767
    %v1897 = vmul.f32 %v1158, %v1768
    %v1898 = vmul.f32 %v1161, %v1769
    %v1899 = vmul.f32 %v1164, %v1770
    %v1900 = vmul.f32 %v1895, 1.442695
    %v1901 = vpow.pop %v1900
    %v1902 = vmul.f32 %v1896, 1.442695
    %v1903 = vpow.pop %v1902
    %v1904 = vmul.f32 %v1897, 1.442695
    %v1905 = vpow.pop %v1904
    %v1906 = vmul.f32 %v1898, 1.442695
    %v1907 = vpow.pop %v1906
    %v1908 = vmul.f32 %v1899, 1.442695
    %v1909 = vpow.pop %v1908
    %v1910 = vperm.slane %v1764, 4
    %v1911 = vmul.f32 %v1167, %v1910
    %v1912 = vmul.f32 %v1170, %v1910
    %v1913 = vmul.f32 %v1173, %v1910
    %v1914 = vmul.f32 %v1176, %v1910
    %v1915 = vmul.f32 %v1179, %v1910
    %v1916 = vmul.f32 %v1901, %v1890
    %v1917 = vmul.f32 %v1903, %v1891
    %v1918 = vmul.f32 %v1905, %v1892
    %v1919 = vmul.f32 %v1907, %v1893
    %v1920 = vmul.f32 %v1909, %v1894
    %v1921 = vadd.f32 %v1916, %v1911
    %v1922 = vadd.f32 %v1917, %v1912
    %v1923 = vadd.f32 %v1918, %v1913
    %v1924 = vadd.f32 %v1919, %v1914
    %v1925 = vadd.f32 %v1920, %v1915
    %v1926 = vmul.f32 %v1199, %v1766
    %v1927 = vmul.f32 %v1202, %v1767
    %v1928 = vmul.f32 %v1205, %v1768
    %v1929 = vmul.f32 %v1208, %v1769
    %v1930 = vmul.f32 %v1211, %v1770
    %v1931 = vmul.f32 %v1926, 1.442695
    %v1932 = vpow.pop %v1931
    %v1933 = vmul.f32 %v1927, 1.442695
    %v1934 = vpow.pop %v1933
    %v1935 = vmul.f32 %v1928, 1.442695
    %v1936 = vpow.pop %v1935
    %v1937 = vmul.f32 %v1929, 1.442695
    %v1938 = vpow.pop %v1937
    %v1939 = vmul.f32 %v1930, 1.442695
    %v1940 = vpow.pop %v1939
    %v1941 = vperm.slane %v1764, 5
    %v1942 = vmul.f32 %v1214, %v1941
    %v1943 = vmul.f32 %v1217, %v1941
    %v1944 = vmul.f32 %v1220, %v1941
    %v1945 = vmul.f32 %v1223, %v1941
    %v1946 = vmul.f32 %v1226, %v1941
    %v1947 = vmul.f32 %v1932, %v1921
    %v1948 = vmul.f32 %v1934, %v1922
    %v1949 = vmul.f32 %v1936, %v1923
    %v1950 = vmul.f32 %v1938, %v1924
    %v1951 = vmul.f32 %v1940, %v1925
    %v1952 = vadd.f32 %v1947, %v1942
    %v1953 = vadd.f32 %v1948, %v1943
    %v1954 = vadd.f32 %v1949, %v1944
    %v1955 = vadd.f32 %v1950, %v1945
    %v1956 = vadd.f32 %v1951, %v1946
    %v1957 = vmul.f32 %v1246, %v1766
    %v1958 = vmul.f32 %v1249, %v1767
    %v1959 = vmul.f32 %v1252, %v1768
    %v1960 = vmul.f32 %v1255, %v1769
    %v1961 = vmul.f32 %v1258, %v1770
    %v1962 = vmul.f32 %v1957, 1.442695
    %v1963 = vpow.pop %v1962
    %v1964 = vmul.f32 %v1958, 1.442695
    %v1965 = vpow.pop %v1964
    %v1966 = vmul.f32 %v1959, 1.442695
    %v1967 = vpow.pop %v1966
    %v1968 = vmul.f32 %v1960, 1.442695
    %v1969 = vpow.pop %v1968
    %v1970 = vmul.f32 %v1961, 1.442695
    %v1971 = vpow.pop %v1970
    %v1972 = vperm.slane %v1764, 6
    %v1973 = vmul.f32 %v1261, %v1972
    %v1974 = vmul.f32 %v1264, %v1972
    %v1975 = vmul.f32 %v1267, %v1972
    %v1976 = vmul.f32 %v1270, %v1972
    %v1977 = vmul.f32 %v1273, %v1972
    %v1978 = vmul.f32 %v1963, %v1952
    %v1979 = vmul.f32 %v1965, %v1953
    %v1980 = vmul.f32 %v1967, %v1954
    %v1981 = vmul.f32 %v1969, %v1955
    %v1982 = vmul.f32 %v1971, %v1956
    %v1983 = vadd.f32 %v1978, %v1973
    %v1984 = vadd.f32 %v1979, %v1974
    %v1985 = vadd.f32 %v1980, %v1975
    %v1986 = vadd.f32 %v1981, %v1976
    %v1987 = vadd.f32 %v1982, %v1977
    %v1988 = vmul.f32 %v1293, %v1766
    %v1989 = vmul.f32 %v1296, %v1767
    %v1990 = vmul.f32 %v1299, %v1768
    %v1991 = vmul.f32 %v1302, %v1769
    %v1992 = vmul.f32 %v1305, %v1770
    %v1993 = vmul.f32 %v1988, 1.442695
    %v1994 = vpow.pop %v1993
    %v1995 = vmul.f32 %v1989, 1.442695
    %v1996 = vpow.pop %v1995
    %v1997 = vmul.f32 %v1990, 1.442695
    %v1998 = vpow.pop %v1997
    %v1999 = vmul.f32 %v1991, 1.442695
    %v2000 = vpow.pop %v1999
    %v2001 = vmul.f32 %v1992, 1.442695
    %v2002 = vpow.pop %v2001
    %v2003 = vperm.slane %v1764, 7
    %v2004 = vmul.f32 %v1308, %v2003
    %v2005 = vmul.f32 %v1311, %v2003
    %v2006 = vmul.f32 %v1314, %v2003
    %v2007 = vmul.f32 %v1317, %v2003
    %v2008 = vmul.f32 %v1320, %v2003
    %v2009 = vmul.f32 %v1994, %v1983
    %v2010 = vmul.f32 %v1996, %v1984
    %v2011 = vmul.f32 %v1998, %v1985
    %v2012 = vmul.f32 %v2000, %v1986
    %v2013 = vmul.f32 %v2002, %v1987
    %v2014 = vadd.f32 %v2009, %v2004
    %v2015 = vadd.f32 %v2010, %v2005
    %v2016 = vadd.f32 %v2011, %v2006
    %v2017 = vadd.f32 %v2012, %v2007
    %v2018 = vadd.f32 %v2013, %v2008
    %v2019 = vmul.f32 %v1340, %v1766
    %v2020 = vmul.f32 %v1343, %v1767
    %v2021 = vmul.f32 %v1346, %v1768
    %v2022 = vmul.f32 %v1349, %v1769
    %v2023 = vmul.f32 %v1352, %v1770
    %v2024 = vmul.f32 %v2019, 1.442695
    %v2025 = vpow.pop %v2024
    %v2026 = vmul.f32 %v2020, 1.442695
    %v2027 = vpow.pop %v2026
    %v2028 = vmul.f32 %v2021, 1.442695
    %v2029 = vpow.pop %v2028
    %v2030 = vmul.f32 %v2022, 1.442695
    %v2031 = vpow.pop %v2030
    %v2032 = vmul.f32 %v2023, 1.442695
    %v2033 = vpow.pop %v2032
    %v2034 = vperm.slane %v1765, 0
    %v2035 = vmul.f32 %v1355, %v2034
    %v2036 = vmul.f32 %v1358, %v2034
    %v2037 = vmul.f32 %v1361, %v2034
    %v2038 = vmul.f32 %v1364, %v2034
    %v2039 = vmul.f32 %v1367, %v2034
    %v2040 = vmul.f32 %v2025, %v2014
    %v2041 = vmul.f32 %v2027, %v2015
    %v2042 = vmul.f32 %v2029, %v2016
    %v2043 = vmul.f32 %v2031, %v2017
    %v2044 = vmul.f32 %v2033, %v2018
    %v2045 = vadd.f32 %v2040, %v2035
    %v2046 = vadd.f32 %v2041, %v2036
    %v2047 = vadd.f32 %v2042, %v2037
    %v2048 = vadd.f32 %v2043, %v2038
    %v2049 = vadd.f32 %v2044, %v2039
    %v2050 = vmul.f32 %v1387, %v1766
    %v2051 = vmul.f32 %v1390, %v1767
    %v2052 = vmul.f32 %v1393, %v1768
    %v2053 = vmul.f32 %v1396, %v1769
    %v2054 = vmul.f32 %v1399, %v1770
    %v2055 = vmul.f32 %v2050, 1.442695
    %v2056 = vpow.pop %v2055
    %v2057 = vmul.f32 %v2051, 1.442695
    %v2058 = vpow.pop %v2057
    %v2059 = vmul.f32 %v2052, 1.442695
    %v2060 = vpow.pop %v2059
    %v2061 = vmul.f32 %v2053, 1.442695
    %v2062 = vpow.pop %v2061
    %v2063 = vmul.f32 %v2054, 1.442695
    %v2064 = vpow.pop %v2063
    %v2065 = vperm.slane %v1765, 1
    %v2066 = vmul.f32 %v1402, %v2065
    %v2067 = vmul.f32 %v1405, %v2065
    %v2068 = vmul.f32 %v1408, %v2065
    %v2069 = vmul.f32 %v1411, %v2065
    %v2070 = vmul.f32 %v1414, %v2065
    %v2071 = vmul.f32 %v2056, %v2045
    %v2072 = vmul.f32 %v2058, %v2046
    %v2073 = vmul.f32 %v2060, %v2047
    %v2074 = vmul.f32 %v2062, %v2048
    %v2075 = vmul.f32 %v2064, %v2049
    %v2076 = vadd.f32 %v2071, %v2066
    %v2077 = vadd.f32 %v2072, %v2067
    %v2078 = vadd.f32 %v2073, %v2068
    %v2079 = vadd.f32 %v2074, %v2069
    %v2080 = vadd.f32 %v2075, %v2070
    %v2081 = vmul.f32 %v1434, %v1766
    %v2082 = vmul.f32 %v1437, %v1767
    %v2083 = vmul.f32 %v1440, %v1768
    %v2084 = vmul.f32 %v1443, %v1769
    %v2085 = vmul.f32 %v1446, %v1770
    %v2086 = vmul.f32 %v2081, 1.442695
    %v2087 = vpow.pop %v2086
    %v2088 = vmul.f32 %v2082, 1.442695
    %v2089 = vpow.pop %v2088
    %v2090 = vmul.f32 %v2083, 1.442695
    %v2091 = vpow.pop %v2090
    %v2092 = vmul.f32 %v2084, 1.442695
    %v2093 = vpow.pop %v2092
    %v2094 = vmul.f32 %v2085, 1.442695
    %v2095 = vpow.pop %v2094
    %v2096 = vperm.slane %v1765, 2
    %v2097 = vmul.f32 %v1449, %v2096
    %v2098 = vmul.f32 %v1452, %v2096
    %v2099 = vmul.f32 %v1455, %v2096
    %v2100 = vmul.f32 %v1458, %v2096
    %v2101 = vmul.f32 %v1461, %v2096
    %v2102 = vmul.f32 %v2087, %v2076
    %v2103 = vmul.f32 %v2089, %v2077
    %v2104 = vmul.f32 %v2091, %v2078
    %v2105 = vmul.f32 %v2093, %v2079
    %v2106 = vmul.f32 %v2095, %v2080
    %v2107 = vadd.f32 %v2102, %v2097
    %v2108 = vadd.f32 %v2103, %v2098
    %v2109 = vadd.f32 %v2104, %v2099
    %v2110 = vadd.f32 %v2105, %v2100
    %v2111 = vadd.f32 %v2106, %v2101
    %v2112 = vmul.f32 %v1481, %v1766
    %v2113 = vmul.f32 %v1484, %v1767
    %v2114 = vmul.f32 %v1487, %v1768
    %v2115 = vmul.f32 %v1490, %v1769
    %v2116 = vmul.f32 %v1493, %v1770
    %v2117 = vmul.f32 %v2112, 1.442695
    %v2118 = vpow.pop %v2117
    %v2119 = vmul.f32 %v2113, 1.442695
    %v2120 = vpow.pop %v2119
    %v2121 = vmul.f32 %v2114, 1.442695
    %v2122 = vpow.pop %v2121
    %v2123 = vmul.f32 %v2115, 1.442695
    %v2124 = vpow.pop %v2123
    %v2125 = vmul.f32 %v2116, 1.442695
    %v2126 = vpow.pop %v2125
    %v2127 = vperm.slane %v1765, 3
    %v2128 = vmul.f32 %v1496, %v2127
    %v2129 = vmul.f32 %v1499, %v2127
    %v2130 = vmul.f32 %v1502, %v2127
    %v2131 = vmul.f32 %v1505, %v2127
    %v2132 = vmul.f32 %v1508, %v2127
    %v2133 = vmul.f32 %v2118, %v2107
    %v2134 = vmul.f32 %v2120, %v2108
    %v2135 = vmul.f32 %v2122, %v2109
    %v2136 = vmul.f32 %v2124, %v2110
    %v2137 = vmul.f32 %v2126, %v2111
    %v2138 = vadd.f32 %v2133, %v2128
    %v2139 = vadd.f32 %v2134, %v2129
    %v2140 = vadd.f32 %v2135, %v2130
    %v2141 = vadd.f32 %v2136, %v2131
    %v2142 = vadd.f32 %v2137, %v2132
    %v2143 = vmul.f32 %v1528, %v1766
    %v2144 = vmul.f32 %v1531, %v1767
    %v2145 = vmul.f32 %v1534, %v1768
    %v2146 = vmul.f32 %v1537, %v1769
    %v2147 = vmul.f32 %v1540, %v1770
    %v2148 = vmul.f32 %v2143, 1.442695
    %v2149 = vpow.pop %v2148
    %v2150 = vmul.f32 %v2144, 1.442695
    %v2151 = vpow.pop %v2150
    %v2152 = vmul.f32 %v2145, 1.442695
    %v2153 = vpow.pop %v2152
    %v2154 = vmul.f32 %v2146, 1.442695
    %v2155 = vpow.pop %v2154
    %v2156 = vmul.f32 %v2147, 1.442695
    %v2157 = vpow.pop %v2156
    %v2158 = vperm.slane %v1765, 4
    %v2159 = vmul.f32 %v1543, %v2158
    %v2160 = vmul.f32 %v1546, %v2158
    %v2161 = vmul.f32 %v1549, %v2158
    %v2162 = vmul.f32 %v1552, %v2158
    %v2163 = vmul.f32 %v1555, %v2158
    %v2164 = vmul.f32 %v2149, %v2138
    %v2165 = vmul.f32 %v2151, %v2139
    %v2166 = vmul.f32 %v2153, %v2140
    %v2167 = vmul.f32 %v2155, %v2141
    %v2168 = vmul.f32 %v2157, %v2142
    %v2169 = vadd.f32 %v2164, %v2159
    %v2170 = vadd.f32 %v2165, %v2160
    %v2171 = vadd.f32 %v2166, %v2161
    %v2172 = vadd.f32 %v2167, %v2162
    %v2173 = vadd.f32 %v2168, %v2163
    %v2174 = vmul.f32 %v1575, %v1766
    %v2175 = vmul.f32 %v1578, %v1767
    %v2176 = vmul.f32 %v1581, %v1768
    %v2177 = vmul.f32 %v1584, %v1769
    %v2178 = vmul.f32 %v1587, %v1770
    %v2179 = vmul.f32 %v2174, 1.442695
    %v2180 = vpow.pop %v2179
    %v2181 = vmul.f32 %v2175, 1.442695
    %v2182 = vpow.pop %v2181
    %v2183 = vmul.f32 %v2176, 1.442695
    %v2184 = vpow.pop %v2183
    %v2185 = vmul.f32 %v2177, 1.442695
    %v2186 = vpow.pop %v2185
    %v2187 = vmul.f32 %v2178, 1.442695
    %v2188 = vpow.pop %v2187
    %v2189 = vperm.slane %v1765, 5
    %v2190 = vmul.f32 %v1590, %v2189
    %v2191 = vmul.f32 %v1593, %v2189
    %v2192 = vmul.f32 %v1596, %v2189
    %v2193 = vmul.f32 %v1599, %v2189
    %v2194 = vmul.f32 %v1602, %v2189
    %v2195 = vmul.f32 %v2180, %v2169
    %v2196 = vmul.f32 %v2182, %v2170
    %v2197 = vmul.f32 %v2184, %v2171
    %v2198 = vmul.f32 %v2186, %v2172
    %v2199 = vmul.f32 %v2188, %v2173
    %v2200 = vadd.f32 %v2195, %v2190
    %v2201 = vadd.f32 %v2196, %v2191
    %v2202 = vadd.f32 %v2197, %v2192
    %v2203 = vadd.f32 %v2198, %v2193
    %v2204 = vadd.f32 %v2199, %v2194
    %v2205 = vmul.f32 %v1622, %v1766
    %v2206 = vmul.f32 %v1625, %v1767
    %v2207 = vmul.f32 %v1628, %v1768
    %v2208 = vmul.f32 %v1631, %v1769
    %v2209 = vmul.f32 %v1634, %v1770
    %v2210 = vmul.f32 %v2205, 1.442695
    %v2211 = vpow.pop %v2210
    %v2212 = vmul.f32 %v2206, 1.442695
    %v2213 = vpow.pop %v2212
    %v2214 = vmul.f32 %v2207, 1.442695
    %v2215 = vpow.pop %v2214
    %v2216 = vmul.f32 %v2208, 1.442695
    %v2217 = vpow.pop %v2216
    %v2218 = vmul.f32 %v2209, 1.442695
    %v2219 = vpow.pop %v2218
    %v2220 = vperm.slane %v1765, 6
    %v2221 = vmul.f32 %v1637, %v2220
    %v2222 = vmul.f32 %v1640, %v2220
    %v2223 = vmul.f32 %v1643, %v2220
    %v2224 = vmul.f32 %v1646, %v2220
    %v2225 = vmul.f32 %v1649, %v2220
    %v2226 = vmul.f32 %v2211, %v2200
    %v2227 = vmul.f32 %v2213, %v2201
    %v2228 = vmul.f32 %v2215, %v2202
    %v2229 = vmul.f32 %v2217, %v2203
    %v2230 = vmul.f32 %v2219, %v2204
    %v2231 = vadd.f32 %v2226, %v2221
    %v2232 = vadd.f32 %v2227, %v2222
    %v2233 = vadd.f32 %v2228, %v2223
    %v2234 = vadd.f32 %v2229, %v2224
    %v2235 = vadd.f32 %v2230, %v2225
    %v2236 = vmul.f32 %v1669, %v1766
    %v2237 = vmul.f32 %v1672, %v1767
    %v2238 = vmul.f32 %v1675, %v1768
    %v2239 = vmul.f32 %v1678, %v1769
    %v2240 = vmul.f32 %v1681, %v1770
    %v2241 = vmul.f32 %v2236, 1.442695
    %v2242 = vpow.pop %v2241
    %v2243 = vmul.f32 %v2237, 1.442695
    %v2244 = vpow.pop %v2243
    %v2245 = vmul.f32 %v2238, 1.442695
    %v2246 = vpow.pop %v2245
    %v2247 = vmul.f32 %v2239, 1.442695
    %v2248 = vpow.pop %v2247
    %v2249 = vmul.f32 %v2240, 1.442695
    %v2250 = vpow.pop %v2249
    %v2251 = vperm.slane %v1765, 7
    %v2252 = vmul.f32 %v1684, %v2251
    %v2253 = vmul.f32 %v1687, %v2251
    %v2254 = vmul.f32 %v1690, %v2251
    %v2255 = vmul.f32 %v1693, %v2251
    %v2256 = vmul.f32 %v1696, %v2251
    %v2257 = vmul.f32 %v2242, %v2231
    %v2258 = vmul.f32 %v2244, %v2232
    %v2259 = vmul.f32 %v2246, %v2233
    %v2260 = vmul.f32 %v2248, %v2234
    %v2261 = vmul.f32 %v2250, %v2235
    %v2262 = vadd.f32 %v2257, %v2252
    %v2263 = vadd.f32 %v2258, %v2253
    %v2264 = vadd.f32 %v2259, %v2254
    %v2265 = vadd.f32 %v2260, %v2255
    %v2266 = vadd.f32 %v2261, %v2256
    %2268 = vrot.lane.b32.xlu0 %v437, 64
    %v2269 = vpop.permute.xlu0 %2268
    %v2271 = vrot.slane %v437, 1
    %v2273 = vsel %vm1763, %v2269, %v2271
    %v2274 = vperm.slane %v2273, 6
    %v2275 = vmul.f32 %v2262, %v2274
    %v2276 = vmul.f32 %v2263, %v2274
    %v2277 = vmul.f32 %v2264, %v2274
    %v2278 = vmul.f32 %v2265, %v2274
    %v2279 = vmul.f32 %v2266, %v2274
    %v2280 = vsel %vm1763, %v2275, 0.0
    %2281 = vadd.xlane.f32.xlu0 %v2280
    %v2282 = vpop.xlane.xlu0 %2281
    %v2283 = vsel %vm1763, %v2276, 0.0
    %2284 = vadd.xlane.f32.xlu0 %v2283
    %v2285 = vpop.xlane.xlu0 %2284
    %v2286 = vsel %vm1763, %v2277, 0.0
    %2287 = vadd.xlane.f32.xlu0 %v2286
    %v2288 = vpop.xlane.xlu0 %2287
    %v2289 = vsel %vm1763, %v2278, 0.0
    %2290 = vadd.xlane.f32.xlu0 %v2289
    %v2291 = vpop.xlane.xlu0 %2290
    %v2292 = vsel %vm1763, %v2279, 0.0
    %2293 = vadd.xlane.f32.xlu0 %v2292
    %v2294 = vpop.xlane.xlu0 %2293
    %2300 = vrot.lane.b32.xlu0 %v2275, 64
    %v2301 = vpop.permute.xlu0 %2300
    %2302 = vrot.lane.b32.xlu0 %v2276, 64
    %v2303 = vpop.permute.xlu0 %2302
    %2304 = vrot.lane.b32.xlu0 %v2277, 64
    %v2305 = vpop.permute.xlu0 %2304
    %2306 = vrot.lane.b32.xlu0 %v2278, 64
    %v2307 = vpop.permute.xlu0 %2306
    %2308 = vrot.lane.b32.xlu0 %v2279, 64
    %v2309 = vpop.permute.xlu0 %2308
    %v2315 = vsel %vm1763, %v2301, 0.0
    %2316 = vadd.xlane.f32.xlu0 %v2315
    %v2317 = vpop.xlane.xlu0 %2316
    %v2318 = vsel %vm1763, %v2303, 0.0
    %2319 = vadd.xlane.f32.xlu0 %v2318
    %v2320 = vpop.xlane.xlu0 %2319
    %v2321 = vsel %vm1763, %v2305, 0.0
    %2322 = vadd.xlane.f32.xlu0 %v2321
    %v2323 = vpop.xlane.xlu0 %2322
    %v2324 = vsel %vm1763, %v2307, 0.0
    %2325 = vadd.xlane.f32.xlu0 %v2324
    %v2326 = vpop.xlane.xlu0 %2325
    %v2327 = vsel %vm1763, %v2309, 0.0
    %2328 = vadd.xlane.f32.xlu0 %v2327
    %v2329 = vpop.xlane.xlu0 %2328
    %vm2330 = vcmask 7168
    %v2331 = vsel %vm2330, %v2282, %v2317
    %v2332 = vsel %vm2330, %v2285, %v2320
    %v2333 = vsel %vm2330, %v2288, %v2323
    %v2334 = vsel %vm2330, %v2291, %v2326
    %v2335 = vsel %vm2330, %v2294, %v2329
    %2336 = vxpose.xlu0.b32.start [1/16] %v2331, 128
    %2337 = vxpose.xlu0.b32.cont [2/16] %v2332, 128
    %2338 = vxpose.xlu0.b32.cont [3/16] %v2333, 128
    %2339 = vxpose.xlu0.b32.cont [4/16] %v2334, 128
    %2340 = vxpose.xlu0.b32.cont [5/16] %v2335, 128
    %2341 = vxpose.xlu0.b32.cont [6/16] 0.0, 128
    %2342 = vxpose.xlu0.b32.cont [7/16] 0.0, 128
    %2343 = vxpose.xlu0.b32.cont [8/16] 0.0, 128
    %2344 = vxpose.xlu0.b32.cont [9/16] 0.0, 128
    %2345 = vxpose.xlu0.b32.cont [10/16] 0.0, 128
    %2346 = vxpose.xlu0.b32.cont [11/16] 0.0, 128
    %2347 = vxpose.xlu0.b32.cont [12/16] 0.0, 128
    %2348 = vxpose.xlu0.b32.cont [13/16] 0.0, 128
    %2349 = vxpose.xlu0.b32.cont [14/16] 0.0, 128
    %2350 = vxpose.xlu0.b32.cont [15/16] 0.0, 128
    %2351 = vxpose.xlu0.b32.end [16/16] 0.0, 128
    %v2352 = vpop.trf.xlu0
    %v2353 = vpop.trf.xlu0
    %v2354 = vpop.trf.xlu0
    %v2355 = vpop.trf.xlu0
    %v2356 = vpop.trf.xlu0
    %v2357 = vpop.trf.xlu0
    %v2358 = vpop.trf.xlu0
    %v2359 = vpop.trf.xlu0
    %v2360 = vpop.trf.xlu0
    %v2361 = vpop.trf.xlu0
    %v2362 = vpop.trf.xlu0
    %v2363 = vpop.trf.xlu0
    %v2364 = vpop.trf.xlu0
    %v2365 = vpop.trf.xlu0
    %v2366 = vpop.trf.xlu0
    %v2367 = vpop.trf.xlu0
    %v2368 = vsub.f32 0.0, %v248
    %v2369 = vmul.f32 %v2368, 1.442695
    %v2370 = vpow.pop %v2369
    %v2371 = vadd.f32 %v2370, 1.0
    %v2372 = vrcp.pop %v2371
    %v2373 = vmul.f32 %v248, %v2372
    %v2374 = vperm.slane %v87, 0
    %v2375 = vmul.f32 %v2374, %v386
    %v2377 = vrot.slane %v2375, 6
    %v2379 = vadd.f32 %v2352, %v2377
    %v2381 = vrot.slane %v2373, 6
    %2382 = vrot.lane.b32.xlu0 %v2381, 88
    %v2383 = vpop.permute.xlu0 %2382
    %v2385 = vmul.f32 %v2379, %v2383
    %v2386 = vperm.slane %v87, 1
    %v2387 = vmul.f32 %v2385, %v2386
    %vm2388 = vcmask 320512
    %v2389 = vsel %vm2388, %v2387, 0.0
    %2390 = vadd.xlane.f32.xlu0 %v2389
    %v2391 = vpop.xlane.xlu0 %2390
    %v2392 = vperm.slane %v87, 2
    %v2393 = vadd.f32 %v2391, %v2392
    %vm2394 = vcmask 1024
    %2395 = vst.msk [vmem:[%s6] sm:$0x3] %vm2394, %v2393
    // Predicated region
    $region42: #{tpu_custom_call.1} parent=1 // pred_check
      _
    $region43: #{tpu_custom_call.1} parent=1 // pred_check_branch
      %2397 = sbr.rel (0) target = $region45
    $region44: #{tpu_custom_call.1} parent=1 // pred_region
      _
    $region45: #{tpu_custom_call.1} parent=1 // pred_fallthru
      _
    // Predicated region
    $region46: #{tpu_custom_call.1} parent=1 // pred_check
      _
    $region47: #{tpu_custom_call.1} parent=1 // pred_check_branch
      %2399 = sbr.rel (0) target = $region49
    $region48: #{tpu_custom_call.1} parent=1 // pred_region
      _
    $region49: #{tpu_custom_call.1} parent=1 // pred_fallthru
      _
    %2400 = vsyncpa [#allocation3], 1
    %2401 = vsyncpa [#allocation5], 1
    %2402 = vsyncpa [#allocation8], 1

</llo_original>
